<compile_context>
chip_gen: v7x
topology: tpu7x:2x2x1
jax: 0.10.0
libtpu: 0.0.40
codegen_flags: <defaults>
</compile_context>

<pallas_src>
import functools

import jax
import jax.numpy as jnp
from jax.experimental import pallas as pl
from jax.experimental.pallas import tpu as pltpu


# ----------------------------------------------------------------------------
# Pallas kernel: one grid step == `bt` whole sequences (attention + FFN).
# ----------------------------------------------------------------------------
def encoder_block_kernel(
    x_ref,       # (bt*S, H)       f32
    bias_ref,    # (bt, S, S)      f32   additive mask bias (0 or -1e30)
    ln1g_ref,    # (1, H)          f32
    ln1b_ref,    # (1, H)          f32
    wq_ref,      # (H, H)          bf16
    wk_ref,      # (H, H)          bf16
    wv_ref,      # (H, H)          bf16
    woh_ref,     # (n_heads, dh, H) bf16  (per-head slices of Wo)
    fw1_ref,     # (H, 4H)         bf16
    fb1_ref,     # (1, 4H)         f32
    fw2_ref,     # (4H, H)         bf16
    fb2_ref,     # (1, H)          f32
    ln2g_ref,    # (1, H)          f32
    ln2b_ref,    # (1, H)          f32
    out_ref,     # (bt*S, H)       f32
    *,
    n_heads: int,
    dh: int,
    bt: int,
    S: int,
):
    f32 = jnp.float32
    bf16 = jnp.bfloat16
    eps = f32(1e-5)
    M = bt * S

    x = x_ref[...]                                   # (M, H) f32

    def layernorm(t, g, b):                          # f32 math
        mu = jnp.mean(t, axis=-1, keepdims=True)
        var = jnp.mean((t - mu) ** 2, axis=-1, keepdims=True)
        return (t - mu) * jax.lax.rsqrt(var + eps) * g + b

    # --- attn_norm ---
    z = layernorm(x, ln1g_ref[...], ln1b_ref[...])
    zb = z.astype(bf16)

    # --- Q/K/V projections: single (M, H) x (H, H) bf16 matmuls, f32 acc ---
    q = jnp.dot(zb, wq_ref[...], preferred_element_type=f32)   # (M, H) f32
    k = jnp.dot(zb, wk_ref[...], preferred_element_type=f32)
    v = jnp.dot(zb, wv_ref[...], preferred_element_type=f32)

    def split_heads(t):
        # (M, H) -> (n_heads*bt, S, dh), group index g = h*bt + b
        # (matches torch's split(dim=-1) + cat(dim=0) head ordering).
        return jnp.concatenate(
            [t[:, h * dh:(h + 1) * dh].reshape(bt, S, dh) for h in range(n_heads)],
            axis=0,
        ).astype(bf16)

    qh = split_heads(q)                               # (G, S, dh) bf16
    kh = split_heads(k)
    vh = split_heads(v)

    # additive mask bias replicated over heads (same ordering g = h*bt + b)
    bias = jnp.concatenate([bias_ref[...]] * n_heads, axis=0)   # (G, S, S) f32

    # --- attention scores: one batched contraction for all heads/batches ---
    scale = f32(1.0 / (dh ** 0.5))
    w = jnp.einsum("gqd,gkd->gqk", qh, kh,
                   preferred_element_type=f32) * scale + bias   # (G, S, S) f32

    # softmax in f32 (EUP reciprocal for the denominator)
    m = jnp.max(w, axis=-1, keepdims=True)
    e = jnp.exp(w - m)
    p = e * pl.reciprocal(jnp.sum(e, axis=-1, keepdims=True), approx=True)

    # --- P @ V: batched over heads ---
    c = jnp.einsum("gqk,gkd->gqd", p.astype(bf16), vh,
                   preferred_element_type=f32)                  # (G, S, dh) f32

    # --- head merge + output projection: per-head Wo, summed over heads ---
    ch = c.reshape(n_heads, M, dh).astype(bf16)                 # (nh, M, dh)
    attn = jnp.einsum("hmd,hdk->hmk", ch, woh_ref[...],
                      preferred_element_type=f32).sum(axis=0)   # (M, H) f32

    # residual (attn_dropout == identity in eval)
    z1 = x + attn

    # --- fc_norm + FFN ---
    z2 = layernorm(z1, ln2g_ref[...], ln2b_ref[...])
    hmid = jnp.dot(z2.astype(bf16), fw1_ref[...],
                   preferred_element_type=f32) + fb1_ref[...]
    hmid = jnp.maximum(hmid, 0.0)                               # ReLU
    fc = jnp.dot(hmid.astype(bf16), fw2_ref[...],
                 preferred_element_type=f32) + fb2_ref[...]

    out_ref[...] = z1 + fc


# ----------------------------------------------------------------------------
# Wrapper
# ----------------------------------------------------------------------------
def encoder_block(x, mask_bool, params, n_heads, *, batch_block=None):
    B, S, H = x.shape
    assert H % n_heads == 0
    dh = H // n_heads
    H4 = 4 * H

    # Fold enough whole sequences per grid step to target ~128-row matmuls.
    if batch_block is None:
        batch_block = max(1, min(B, 128 // S if S <= 128 else 1))
    bt = batch_block
    assert B % bt == 0
    grid_steps = B // bt
    M = bt * S

    (ln1g, ln1b, wq, wk, wv, wo, fw1, fb1, fw2, fb2, ln2g, ln2b) = params

    f32, bf16 = jnp.float32, jnp.bfloat16

    x2 = x.reshape(B * S, H).astype(f32)
    # additive mask bias: 0 where visible, -1e30 where masked
    bias = jnp.where(mask_bool, f32(-1e30), f32(0.0))           # (B, S, S) f32
    woh = wo.reshape(n_heads, dh, H).astype(bf16)               # per-head Wo slices

    kernel = functools.partial(encoder_block_kernel,
                               n_heads=n_heads, dh=dh, bt=bt, S=S)

    row_map = lambda i: (i, 0)
    batch_map = lambda i: (i, 0, 0)
    shared2 = lambda i: (0, 0)
    shared3 = lambda i: (0, 0, 0)

    # Weight blocks use constant index maps (revisited, not re-fetched per step).
    in_specs = [
        pl.BlockSpec((M, H), row_map),              # x rows
        pl.BlockSpec((bt, S, S), batch_map),        # mask bias
        pl.BlockSpec((1, H), shared2),              # ln1 gamma
        pl.BlockSpec((1, H), shared2),              # ln1 beta
        pl.BlockSpec((H, H), shared2),              # Wq
        pl.BlockSpec((H, H), shared2),              # Wk
        pl.BlockSpec((H, H), shared2),              # Wv
        pl.BlockSpec((n_heads, dh, H), shared3),    # Wo (per-head)
        pl.BlockSpec((H, H4), shared2),             # fc W1
        pl.BlockSpec((1, H4), shared2),             # fc b1
        pl.BlockSpec((H4, H), shared2),             # fc W2
        pl.BlockSpec((1, H), shared2),              # fc b2
        pl.BlockSpec((1, H), shared2),              # ln2 gamma
        pl.BlockSpec((1, H), shared2),              # ln2 beta
    ]

    flops = 24 * (B * S) * H * H + 4 * B * S * S * H
    transcendentals = B * n_heads * S * S
    bytes_accessed = (
        4 * 2 * B * S * H            # x in + out (f32)
        + 4 * B * S * S              # mask bias (f32)
        + 2 * 12 * H * H             # bf16 weights: Wq/Wk/Wv/Wo + fw1 + fw2
        + 4 * (4 * H + H4 + H)       # f32 LN params + biases
    )

    out2 = pl.pallas_call(
        kernel,
        out_shape=jax.ShapeDtypeStruct((B * S, H), f32),
        grid=(grid_steps,),
        in_specs=in_specs,
        out_specs=pl.BlockSpec((M, H), row_map),
        compiler_params=pltpu.CompilerParams(
            dimension_semantics=("parallel",),
            vmem_limit_bytes=32 * 1024 * 1024,
        ),
        cost_estimate=pl.CostEstimate(
            flops=flops,
            transcendentals=transcendentals,
            bytes_accessed=bytes_accessed,
        ),
    )(
        x2, bias,
        ln1g.reshape(1, H).astype(f32), ln1b.reshape(1, H).astype(f32),
        wq.astype(bf16), wk.astype(bf16), wv.astype(bf16),
        woh,
        fw1.astype(bf16), fb1.reshape(1, H4).astype(f32),
        fw2.astype(bf16), fb2.reshape(1, H).astype(f32),
        ln2g.reshape(1, H).astype(f32), ln2b.reshape(1, H).astype(f32),
    )
    return out2.reshape(B, S, H), mask_bool


# ----------------------------------------------------------------------------
# Pure-JAX f32 reference (mirrors the PyTorch forward exactly)
# ----------------------------------------------------------------------------
def encoder_block_ref(x, mask_bool, params, n_heads):
    (ln1g, ln1b, wq, wk, wv, wo, fw1, fb1, fw2, fb2, ln2g, ln2b) = params
    B, S, H = x.shape
    dh = H // n_heads
    eps = 1e-5

    def ln(t, g, b):
        mu = jnp.mean(t, axis=-1, keepdims=True)
        var = jnp.mean((t - mu) ** 2, axis=-1, keepdims=True)
        return (t - mu) / jnp.sqrt(var + eps) * g + b

    z = ln(x, ln1g, ln1b)
    q, k, v = z @ wq, z @ wk, z @ wv
    qh = jnp.concatenate(jnp.split(q, n_heads, axis=-1), axis=0)
    kh = jnp.concatenate(jnp.split(k, n_heads, axis=-1), axis=0)
    vh = jnp.concatenate(jnp.split(v, n_heads, axis=-1), axis=0)
    mh = jnp.concatenate([mask_bool] * n_heads, axis=0)
    w = jnp.einsum("bqd,bkd->bqk", qh, kh)
    w = jnp.where(mh, -jnp.inf, w) / (dh ** 0.5)
    p = jax.nn.softmax(w, axis=-1)
    c = jnp.einsum("bqk,bkd->bqd", p, vh)
    c = jnp.concatenate(jnp.split(c, n_heads, axis=0), axis=-1)
    z1 = x + c @ wo
    z2 = ln(z1, ln2g, ln2b)
    fc_out = jnp.maximum(z2 @ fw1 + fb1, 0.0) @ fw2 + fb2
    return z1 + fc_out


# ----------------------------------------------------------------------------
if __name__ == "__main__":
    B, S, H = 2, 8, 32
    n_heads = 4

    key = jax.random.PRNGKey(0)
    keys = jax.random.split(key, 16)

    x = jax.random.normal(keys[0], (B, S, H), dtype=jnp.float32)

    # mask: True == masked; keep the diagonal unmasked so no row is fully masked
    mask_bool = jax.random.uniform(keys[1], (B, S, S)) < 0.25
    eye = jnp.eye(S, dtype=bool)[None]
    mask_bool = jnp.logical_and(mask_bool, jnp.logical_not(eye))

    s = 0.05
    params = (
        1.0 + s * jax.random.normal(keys[2], (H,), jnp.float32),        # ln1 gamma
        s * jax.random.normal(keys[3], (H,), jnp.float32),              # ln1 beta
        s * jax.random.normal(keys[4], (H, H), jnp.float32),            # Wq (in,out)
        s * jax.random.normal(keys[5], (H, H), jnp.float32),            # Wk
        s * jax.random.normal(keys[6], (H, H), jnp.float32),            # Wv
        s * jax.random.normal(keys[7], (H, H), jnp.float32),            # Wo
        s * jax.random.normal(keys[8], (H, 4 * H), jnp.float32),        # fc W1
        s * jax.random.normal(keys[9], (4 * H,), jnp.float32),          # fc b1
        s * jax.random.normal(keys[10], (4 * H, H), jnp.float32),       # fc W2
        s * jax.random.normal(keys[11], (H,), jnp.float32),             # fc b2
        1.0 + s * jax.random.normal(keys[12], (H,), jnp.float32),       # ln2 gamma
        s * jax.random.normal(keys[13], (H,), jnp.float32),             # ln2 beta
    )

    out, mask_out = encoder_block(x, mask_bool, params, n_heads)
    out = jax.block_until_ready(out)

    ref = encoder_block_ref(x, mask_bool, params, n_heads)
    assert out.shape == (B, S, H)
    err = float(jnp.max(jnp.abs(out - ref)))
    # bf16 MXU operands -> relaxed tolerance vs. the f32 reference
    assert jnp.allclose(out, ref, atol=3e-2, rtol=3e-2), err

    print("KERNEL_OK")
</pallas_src>

<mosaic_0001>
module attributes {stable_mosaic.version = 11 : i64} {
  func.func @encoder_block_kernel(%arg0: i32, %arg1: memref<16x32xf32, #tpu.memory_space<vmem>>, %arg2: memref<2x8x8xf32, #tpu.memory_space<vmem>>, %arg3: memref<1x32xf32, #tpu.memory_space<vmem>>, %arg4: memref<1x32xf32, #tpu.memory_space<vmem>>, %arg5: memref<32x32xbf16, #tpu.memory_space<vmem>>, %arg6: memref<32x32xbf16, #tpu.memory_space<vmem>>, %arg7: memref<32x32xbf16, #tpu.memory_space<vmem>>, %arg8: memref<4x8x32xbf16, #tpu.memory_space<vmem>>, %arg9: memref<32x128xbf16, #tpu.memory_space<vmem>>, %arg10: memref<1x128xf32, #tpu.memory_space<vmem>>, %arg11: memref<128x32xbf16, #tpu.memory_space<vmem>>, %arg12: memref<1x32xf32, #tpu.memory_space<vmem>>, %arg13: memref<1x32xf32, #tpu.memory_space<vmem>>, %arg14: memref<1x32xf32, #tpu.memory_space<vmem>>, %arg15: memref<16x32xf32, #tpu.memory_space<vmem>>) attributes {dimension_semantics = [#tpu.dimension_semantics<parallel>], iteration_bounds = array<i64: 1>, scalar_prefetch = 0 : i64, scratch_operands = 0 : i64, tpu.core_type = #tpu.core_type<tc>, window_params = [{transform_indices = @transform_0, window_bounds = array<i64: 16, 32>}, {transform_indices = @transform_1, window_bounds = array<i64: 2, 8, 8>}, {pipeline_mode = #tpu.pipeline_mode<synchronous>, transform_indices = @transform_2, window_bounds = array<i64: 1, 32>}, {pipeline_mode = #tpu.pipeline_mode<synchronous>, transform_indices = @transform_3, window_bounds = array<i64: 1, 32>}, {pipeline_mode = #tpu.pipeline_mode<synchronous>, transform_indices = @transform_4, window_bounds = array<i64: 32, 32>}, {pipeline_mode = #tpu.pipeline_mode<synchronous>, transform_indices = @transform_5, window_bounds = array<i64: 32, 32>}, {pipeline_mode = #tpu.pipeline_mode<synchronous>, transform_indices = @transform_6, window_bounds = array<i64: 32, 32>}, {pipeline_mode = #tpu.pipeline_mode<synchronous>, transform_indices = @transform_7, window_bounds = array<i64: 4, 8, 32>}, {pipeline_mode = #tpu.pipeline_mode<synchronous>, transform_indices = @transform_8, window_bounds = array<i64: 32, 128>}, {pipeline_mode = #tpu.pipeline_mode<synchronous>, transform_indices = @transform_9, window_bounds = array<i64: 1, 128>}, {pipeline_mode = #tpu.pipeline_mode<synchronous>, transform_indices = @transform_10, window_bounds = array<i64: 128, 32>}, {pipeline_mode = #tpu.pipeline_mode<synchronous>, transform_indices = @transform_11, window_bounds = array<i64: 1, 32>}, {pipeline_mode = #tpu.pipeline_mode<synchronous>, transform_indices = @transform_12, window_bounds = array<i64: 1, 32>}, {pipeline_mode = #tpu.pipeline_mode<synchronous>, transform_indices = @transform_13, window_bounds = array<i64: 1, 32>}, {transform_indices = @transform_14, window_bounds = array<i64: 16, 32>}]} {
    %c0 = arith.constant 0 : index
    %c0_0 = arith.constant 0 : index
    %0 = vector.load %arg1[%c0, %c0_0] : memref<16x32xf32, #tpu.memory_space<vmem>>, vector<16x32xf32>
    %c0_1 = arith.constant 0 : index
    %c0_2 = arith.constant 0 : index
    %1 = vector.load %arg3[%c0_1, %c0_2] : memref<1x32xf32, #tpu.memory_space<vmem>>, vector<1x32xf32>
    %c0_3 = arith.constant 0 : index
    %c0_4 = arith.constant 0 : index
    %2 = vector.load %arg4[%c0_3, %c0_4] : memref<1x32xf32, #tpu.memory_space<vmem>>, vector<1x32xf32>
    %cst = arith.constant dense<0.000000e+00> : vector<16xf32>
    %3 = vector.multi_reduction <add>, %0, %cst [1] : vector<16x32xf32> to vector<16xf32>
    %4 = vector.shape_cast %3 : vector<16xf32> to vector<16x1xf32>
    %cst_5 = arith.constant 3.200000e+01 : f32
    %5 = vector.broadcast %cst_5 : f32 to vector<16x1xf32>
    %6 = arith.divf %4, %5 : vector<16x1xf32>
    %7 = vector.broadcast %6 : vector<16x1xf32> to vector<16x32xf32>
    %8 = arith.subf %0, %7 : vector<16x32xf32>
    %9 = arith.mulf %8, %8 : vector<16x32xf32>
    %cst_6 = arith.constant dense<0.000000e+00> : vector<16xf32>
    %10 = vector.multi_reduction <add>, %9, %cst_6 [1] : vector<16x32xf32> to vector<16xf32>
    %11 = vector.shape_cast %10 : vector<16xf32> to vector<16x1xf32>
    %cst_7 = arith.constant 3.200000e+01 : f32
    %12 = vector.broadcast %cst_7 : f32 to vector<16x1xf32>
    %13 = arith.divf %11, %12 : vector<16x1xf32>
    %14 = vector.broadcast %6 : vector<16x1xf32> to vector<16x32xf32>
    %15 = arith.subf %0, %14 : vector<16x32xf32>
    %cst_8 = arith.constant 9.99999974E-6 : f32
    %16 = vector.broadcast %cst_8 : f32 to vector<16x1xf32>
    %17 = arith.addf %13, %16 : vector<16x1xf32>
    %18 = math.rsqrt %17 : vector<16x1xf32>
    %19 = vector.broadcast %18 : vector<16x1xf32> to vector<16x32xf32>
    %20 = arith.mulf %15, %19 : vector<16x32xf32>
    %21 = vector.broadcast %1 : vector<1x32xf32> to vector<16x32xf32>
    %22 = arith.mulf %20, %21 : vector<16x32xf32>
    %23 = vector.broadcast %2 : vector<1x32xf32> to vector<16x32xf32>
    %24 = arith.addf %22, %23 : vector<16x32xf32>
    %25 = arith.truncf %24 : vector<16x32xf32> to vector<16x32xbf16>
    %c0_9 = arith.constant 0 : index
    %c0_10 = arith.constant 0 : index
    %26 = vector.load %arg5[%c0_9, %c0_10] : memref<32x32xbf16, #tpu.memory_space<vmem>>, vector<32x32xbf16>
    %cst_11 = arith.constant dense<0.000000e+00> : vector<16x32xf32>
    %27 = tpu.matmul %25, %26, %cst_11 {dimension_numbers = #tpu.dot_dimension_numbers<[1], [0], [0], [1], [0, 0, 1, 1], [], []>} : vector<16x32xbf16>, vector<32x32xbf16>, vector<16x32xf32> -> vector<16x32xf32>
    %c0_12 = arith.constant 0 : index
    %c0_13 = arith.constant 0 : index
    %28 = vector.load %arg6[%c0_12, %c0_13] : memref<32x32xbf16, #tpu.memory_space<vmem>>, vector<32x32xbf16>
    %cst_14 = arith.constant dense<0.000000e+00> : vector<16x32xf32>
    %29 = tpu.matmul %25, %28, %cst_14 {dimension_numbers = #tpu.dot_dimension_numbers<[1], [0], [0], [1], [0, 0, 1, 1], [], []>} : vector<16x32xbf16>, vector<32x32xbf16>, vector<16x32xf32> -> vector<16x32xf32>
    %c0_15 = arith.constant 0 : index
    %c0_16 = arith.constant 0 : index
    %30 = vector.load %arg7[%c0_15, %c0_16] : memref<32x32xbf16, #tpu.memory_space<vmem>>, vector<32x32xbf16>
    %cst_17 = arith.constant dense<0.000000e+00> : vector<16x32xf32>
    %31 = tpu.matmul %25, %30, %cst_17 {dimension_numbers = #tpu.dot_dimension_numbers<[1], [0], [0], [1], [0, 0, 1, 1], [], []>} : vector<16x32xbf16>, vector<32x32xbf16>, vector<16x32xf32> -> vector<16x32xf32>
    %32 = vector.extract_strided_slice %27 {offsets = [0, 0], sizes = [16, 8], strides = [1, 1]} : vector<16x32xf32> to vector<16x8xf32>
    %33 = vector.shape_cast %32 : vector<16x8xf32> to vector<2x8x8xf32>
    %34 = vector.extract_strided_slice %27 {offsets = [0, 8], sizes = [16, 8], strides = [1, 1]} : vector<16x32xf32> to vector<16x8xf32>
    %35 = vector.shape_cast %34 : vector<16x8xf32> to vector<2x8x8xf32>
    %36 = vector.extract_strided_slice %27 {offsets = [0, 16], sizes = [16, 8], strides = [1, 1]} : vector<16x32xf32> to vector<16x8xf32>
    %37 = vector.shape_cast %36 : vector<16x8xf32> to vector<2x8x8xf32>
    %38 = vector.extract_strided_slice %27 {offsets = [0, 24], sizes = [16, 8], strides = [1, 1]} : vector<16x32xf32> to vector<16x8xf32>
    %39 = vector.shape_cast %38 : vector<16x8xf32> to vector<2x8x8xf32>
    %40 = tpu.concatenate %33, %35, %37, %39 in 0 : vector<2x8x8xf32>, vector<2x8x8xf32>, vector<2x8x8xf32>, vector<2x8x8xf32> -> vector<8x8x8xf32>
    %41 = arith.truncf %40 : vector<8x8x8xf32> to vector<8x8x8xbf16>
    %42 = vector.extract_strided_slice %29 {offsets = [0, 0], sizes = [16, 8], strides = [1, 1]} : vector<16x32xf32> to vector<16x8xf32>
    %43 = vector.shape_cast %42 : vector<16x8xf32> to vector<2x8x8xf32>
    %44 = vector.extract_strided_slice %29 {offsets = [0, 8], sizes = [16, 8], strides = [1, 1]} : vector<16x32xf32> to vector<16x8xf32>
    %45 = vector.shape_cast %44 : vector<16x8xf32> to vector<2x8x8xf32>
    %46 = vector.extract_strided_slice %29 {offsets = [0, 16], sizes = [16, 8], strides = [1, 1]} : vector<16x32xf32> to vector<16x8xf32>
    %47 = vector.shape_cast %46 : vector<16x8xf32> to vector<2x8x8xf32>
    %48 = vector.extract_strided_slice %29 {offsets = [0, 24], sizes = [16, 8], strides = [1, 1]} : vector<16x32xf32> to vector<16x8xf32>
    %49 = vector.shape_cast %48 : vector<16x8xf32> to vector<2x8x8xf32>
    %50 = tpu.concatenate %43, %45, %47, %49 in 0 : vector<2x8x8xf32>, vector<2x8x8xf32>, vector<2x8x8xf32>, vector<2x8x8xf32> -> vector<8x8x8xf32>
    %51 = arith.truncf %50 : vector<8x8x8xf32> to vector<8x8x8xbf16>
    %52 = vector.extract_strided_slice %31 {offsets = [0, 0], sizes = [16, 8], strides = [1, 1]} : vector<16x32xf32> to vector<16x8xf32>
    %53 = vector.shape_cast %52 : vector<16x8xf32> to vector<2x8x8xf32>
    %54 = vector.extract_strided_slice %31 {offsets = [0, 8], sizes = [16, 8], strides = [1, 1]} : vector<16x32xf32> to vector<16x8xf32>
    %55 = vector.shape_cast %54 : vector<16x8xf32> to vector<2x8x8xf32>
    %56 = vector.extract_strided_slice %31 {offsets = [0, 16], sizes = [16, 8], strides = [1, 1]} : vector<16x32xf32> to vector<16x8xf32>
    %57 = vector.shape_cast %56 : vector<16x8xf32> to vector<2x8x8xf32>
    %58 = vector.extract_strided_slice %31 {offsets = [0, 24], sizes = [16, 8], strides = [1, 1]} : vector<16x32xf32> to vector<16x8xf32>
    %59 = vector.shape_cast %58 : vector<16x8xf32> to vector<2x8x8xf32>
    %60 = tpu.concatenate %53, %55, %57, %59 in 0 : vector<2x8x8xf32>, vector<2x8x8xf32>, vector<2x8x8xf32>, vector<2x8x8xf32> -> vector<8x8x8xf32>
    %61 = arith.truncf %60 : vector<8x8x8xf32> to vector<8x8x8xbf16>
    %c0_18 = arith.constant 0 : index
    %c0_19 = arith.constant 0 : index
    %c0_20 = arith.constant 0 : index
    %62 = vector.load %arg2[%c0_18, %c0_19, %c0_20] : memref<2x8x8xf32, #tpu.memory_space<vmem>>, vector<2x8x8xf32>
    %63 = tpu.concatenate %62, %62, %62, %62 in 0 : vector<2x8x8xf32>, vector<2x8x8xf32>, vector<2x8x8xf32>, vector<2x8x8xf32> -> vector<8x8x8xf32>
    "tpu.trace_start"() <{level = 10 : i32, message = "gqd,gkd->gqk"}> : () -> ()
    %cst_21 = arith.constant dense<0.000000e+00> : vector<8x8x8xf32>
    %64 = tpu.matmul %41, %51, %cst_21 {dimension_numbers = #tpu.dot_dimension_numbers<[2], [2], [1], [1], [0, 0, 0, 1, 1, 1], [0], [0]>} : vector<8x8x8xbf16>, vector<8x8x8xbf16>, vector<8x8x8xf32> -> vector<8x8x8xf32>
    "tpu.trace_stop"() : () -> ()
    %cst_22 = arith.constant 0.353553385 : f32
    %65 = vector.broadcast %cst_22 : f32 to vector<8x8x8xf32>
    %66 = arith.mulf %64, %65 : vector<8x8x8xf32>
    %67 = arith.addf %66, %63 : vector<8x8x8xf32>
    %cst_23 = arith.constant dense<0xFF800000> : vector<8x8xf32>
    %68 = vector.multi_reduction <maximumf>, %67, %cst_23 [2] : vector<8x8x8xf32> to vector<8x8xf32>
    %69 = vector.shape_cast %68 : vector<8x8xf32> to vector<8x8x1xf32>
    %70 = vector.broadcast %69 : vector<8x8x1xf32> to vector<8x8x8xf32>
    %71 = arith.subf %67, %70 : vector<8x8x8xf32>
    %72 = math.exp %71 : vector<8x8x8xf32>
    %cst_24 = arith.constant dense<0.000000e+00> : vector<8x8xf32>
    %73 = vector.multi_reduction <add>, %72, %cst_24 [2] : vector<8x8x8xf32> to vector<8x8xf32>
    %74 = vector.shape_cast %73 : vector<8x8xf32> to vector<8x8x1xf32>
    %75 = tpu.reciprocal %74 {approx = true} : vector<8x8x1xf32> -> vector<8x8x1xf32>
    %76 = vector.broadcast %75 : vector<8x8x1xf32> to vector<8x8x8xf32>
    %77 = arith.mulf %72, %76 : vector<8x8x8xf32>
    %78 = arith.truncf %77 : vector<8x8x8xf32> to vector<8x8x8xbf16>
    "tpu.trace_start"() <{level = 10 : i32, message = "gqk,gkd->gqd"}> : () -> ()
    %cst_25 = arith.constant dense<0.000000e+00> : vector<8x8x8xf32>
    %79 = tpu.matmul %78, %61, %cst_25 {dimension_numbers = #tpu.dot_dimension_numbers<[2], [1], [1], [2], [0, 0, 0, 1, 1, 2], [0], [0]>} : vector<8x8x8xbf16>, vector<8x8x8xbf16>, vector<8x8x8xf32> -> vector<8x8x8xf32>
    "tpu.trace_stop"() : () -> ()
    %80 = vector.shape_cast %79 : vector<8x8x8xf32> to vector<4x16x8xf32>
    %81 = arith.truncf %80 : vector<4x16x8xf32> to vector<4x16x8xbf16>
    %c0_26 = arith.constant 0 : index
    %c0_27 = arith.constant 0 : index
    %c0_28 = arith.constant 0 : index
    %82 = vector.load %arg8[%c0_26, %c0_27, %c0_28] : memref<4x8x32xbf16, #tpu.memory_space<vmem>>, vector<4x8x32xbf16>
    "tpu.trace_start"() <{level = 10 : i32, message = "hmd,hdk->hmk"}> : () -> ()
    %cst_29 = arith.constant dense<0.000000e+00> : vector<4x16x32xf32>
    %83 = tpu.matmul %81, %82, %cst_29 {dimension_numbers = #tpu.dot_dimension_numbers<[2], [1], [1], [2], [0, 0, 0, 1, 1, 2], [0], [0]>} : vector<4x16x8xbf16>, vector<4x8x32xbf16>, vector<4x16x32xf32> -> vector<4x16x32xf32>
    "tpu.trace_stop"() : () -> ()
    %cst_30 = arith.constant dense<0.000000e+00> : vector<16x32xf32>
    %84 = vector.multi_reduction <add>, %83, %cst_30 [0] : vector<4x16x32xf32> to vector<16x32xf32>
    %85 = arith.addf %0, %84 : vector<16x32xf32>
    %c0_31 = arith.constant 0 : index
    %c0_32 = arith.constant 0 : index
    %86 = vector.load %arg13[%c0_31, %c0_32] : memref<1x32xf32, #tpu.memory_space<vmem>>, vector<1x32xf32>
    %c0_33 = arith.constant 0 : index
    %c0_34 = arith.constant 0 : index
    %87 = vector.load %arg14[%c0_33, %c0_34] : memref<1x32xf32, #tpu.memory_space<vmem>>, vector<1x32xf32>
    %cst_35 = arith.constant dense<0.000000e+00> : vector<16xf32>
    %88 = vector.multi_reduction <add>, %85, %cst_35 [1] : vector<16x32xf32> to vector<16xf32>
    %89 = vector.shape_cast %88 : vector<16xf32> to vector<16x1xf32>
    %cst_36 = arith.constant 3.200000e+01 : f32
    %90 = vector.broadcast %cst_36 : f32 to vector<16x1xf32>
    %91 = arith.divf %89, %90 : vector<16x1xf32>
    %92 = vector.broadcast %91 : vector<16x1xf32> to vector<16x32xf32>
    %93 = arith.subf %85, %92 : vector<16x32xf32>
    %94 = arith.mulf %93, %93 : vector<16x32xf32>
    %cst_37 = arith.constant dense<0.000000e+00> : vector<16xf32>
    %95 = vector.multi_reduction <add>, %94, %cst_37 [1] : vector<16x32xf32> to vector<16xf32>
    %96 = vector.shape_cast %95 : vector<16xf32> to vector<16x1xf32>
    %cst_38 = arith.constant 3.200000e+01 : f32
    %97 = vector.broadcast %cst_38 : f32 to vector<16x1xf32>
    %98 = arith.divf %96, %97 : vector<16x1xf32>
    %99 = vector.broadcast %91 : vector<16x1xf32> to vector<16x32xf32>
    %100 = arith.subf %85, %99 : vector<16x32xf32>
    %cst_39 = arith.constant 9.99999974E-6 : f32
    %101 = vector.broadcast %cst_39 : f32 to vector<16x1xf32>
    %102 = arith.addf %98, %101 : vector<16x1xf32>
    %103 = math.rsqrt %102 : vector<16x1xf32>
    %104 = vector.broadcast %103 : vector<16x1xf32> to vector<16x32xf32>
    %105 = arith.mulf %100, %104 : vector<16x32xf32>
    %106 = vector.broadcast %86 : vector<1x32xf32> to vector<16x32xf32>
    %107 = arith.mulf %105, %106 : vector<16x32xf32>
    %108 = vector.broadcast %87 : vector<1x32xf32> to vector<16x32xf32>
    %109 = arith.addf %107, %108 : vector<16x32xf32>
    %110 = arith.truncf %109 : vector<16x32xf32> to vector<16x32xbf16>
    %c0_40 = arith.constant 0 : index
    %c0_41 = arith.constant 0 : index
    %111 = vector.load %arg9[%c0_40, %c0_41] : memref<32x128xbf16, #tpu.memory_space<vmem>>, vector<32x128xbf16>
    %cst_42 = arith.constant dense<0.000000e+00> : vector<16x128xf32>
    %112 = tpu.matmul %110, %111, %cst_42 {dimension_numbers = #tpu.dot_dimension_numbers<[1], [0], [0], [1], [0, 0, 1, 1], [], []>} : vector<16x32xbf16>, vector<32x128xbf16>, vector<16x128xf32> -> vector<16x128xf32>
    %c0_43 = arith.constant 0 : index
    %c0_44 = arith.constant 0 : index
    %113 = vector.load %arg10[%c0_43, %c0_44] : memref<1x128xf32, #tpu.memory_space<vmem>>, vector<1x128xf32>
    %114 = vector.broadcast %113 : vector<1x128xf32> to vector<16x128xf32>
    %115 = arith.addf %112, %114 : vector<16x128xf32>
    %cst_45 = arith.constant 0.000000e+00 : f32
    %116 = vector.broadcast %cst_45 : f32 to vector<16x128xf32>
    %117 = arith.maximumf %115, %116 : vector<16x128xf32>
    %118 = arith.truncf %117 : vector<16x128xf32> to vector<16x128xbf16>
    %c0_46 = arith.constant 0 : index
    %c0_47 = arith.constant 0 : index
    %119 = vector.load %arg11[%c0_46, %c0_47] : memref<128x32xbf16, #tpu.memory_space<vmem>>, vector<128x32xbf16>
    %cst_48 = arith.constant dense<0.000000e+00> : vector<16x32xf32>
    %120 = tpu.matmul %118, %119, %cst_48 {dimension_numbers = #tpu.dot_dimension_numbers<[1], [0], [0], [1], [0, 0, 1, 1], [], []>} : vector<16x128xbf16>, vector<128x32xbf16>, vector<16x32xf32> -> vector<16x32xf32>
    %c0_49 = arith.constant 0 : index
    %c0_50 = arith.constant 0 : index
    %121 = vector.load %arg12[%c0_49, %c0_50] : memref<1x32xf32, #tpu.memory_space<vmem>>, vector<1x32xf32>
    %122 = vector.broadcast %121 : vector<1x32xf32> to vector<16x32xf32>
    %123 = arith.addf %120, %122 : vector<16x32xf32>
    %124 = arith.addf %85, %123 : vector<16x32xf32>
    %c0_51 = arith.constant 0 : index
    %c0_52 = arith.constant 0 : index
    %125 = vector.load %arg15[%c0_51, %c0_52] : memref<16x32xf32, #tpu.memory_space<vmem>>, vector<16x32xf32>
    tpu.vector_store %arg15[%c0_51, %c0_52], %124 {strides = array<i32>} : memref<16x32xf32, #tpu.memory_space<vmem>>, vector<16x32xf32>,
    return
  }
  func.func @transform_0(%arg0: i32) -> (i32, i32) {
    %c0_i32 = arith.constant 0 : i32
    %c0_i32_0 = arith.constant 0 : i32
    return %arg0, %c0_i32 : i32, i32
  }
  func.func @transform_1(%arg0: i32) -> (i32, i32, i32) {
    %c0_i32 = arith.constant 0 : i32
    %c0_i32_0 = arith.constant 0 : i32
    %c0_i32_1 = arith.constant 0 : i32
    return %arg0, %c0_i32, %c0_i32_0 : i32, i32, i32
  }
  func.func @transform_2(%arg0: i32) -> (i32, i32) {
    %c0_i32 = arith.constant 0 : i32
    %c0_i32_0 = arith.constant 0 : i32
    %c0_i32_1 = arith.constant 0 : i32
    return %c0_i32, %c0_i32_0 : i32, i32
  }
  func.func @transform_3(%arg0: i32) -> (i32, i32) {
    %c0_i32 = arith.constant 0 : i32
    %c0_i32_0 = arith.constant 0 : i32
    %c0_i32_1 = arith.constant 0 : i32
    return %c0_i32, %c0_i32_0 : i32, i32
  }
  func.func @transform_4(%arg0: i32) -> (i32, i32) {
    %c0_i32 = arith.constant 0 : i32
    %c0_i32_0 = arith.constant 0 : i32
    %c0_i32_1 = arith.constant 0 : i32
    return %c0_i32, %c0_i32_0 : i32, i32
  }
  func.func @transform_5(%arg0: i32) -> (i32, i32) {
    %c0_i32 = arith.constant 0 : i32
    %c0_i32_0 = arith.constant 0 : i32
    %c0_i32_1 = arith.constant 0 : i32
    return %c0_i32, %c0_i32_0 : i32, i32
  }
  func.func @transform_6(%arg0: i32) -> (i32, i32) {
    %c0_i32 = arith.constant 0 : i32
    %c0_i32_0 = arith.constant 0 : i32
    %c0_i32_1 = arith.constant 0 : i32
    return %c0_i32, %c0_i32_0 : i32, i32
  }
  func.func @transform_7(%arg0: i32) -> (i32, i32, i32) {
    %c0_i32 = arith.constant 0 : i32
    %c0_i32_0 = arith.constant 0 : i32
    %c0_i32_1 = arith.constant 0 : i32
    %c0_i32_2 = arith.constant 0 : i32
    return %c0_i32, %c0_i32_0, %c0_i32_1 : i32, i32, i32
  }
  func.func @transform_8(%arg0: i32) -> (i32, i32) {
    %c0_i32 = arith.constant 0 : i32
    %c0_i32_0 = arith.constant 0 : i32
    %c0_i32_1 = arith.constant 0 : i32
    return %c0_i32, %c0_i32_0 : i32, i32
  }
  func.func @transform_9(%arg0: i32) -> (i32, i32) {
    %c0_i32 = arith.constant 0 : i32
    %c0_i32_0 = arith.constant 0 : i32
    %c0_i32_1 = arith.constant 0 : i32
    return %c0_i32, %c0_i32_0 : i32, i32
  }
  func.func @transform_10(%arg0: i32) -> (i32, i32) {
    %c0_i32 = arith.constant 0 : i32
    %c0_i32_0 = arith.constant 0 : i32
    %c0_i32_1 = arith.constant 0 : i32
    return %c0_i32, %c0_i32_0 : i32, i32
  }
  func.func @transform_11(%arg0: i32) -> (i32, i32) {
    %c0_i32 = arith.constant 0 : i32
    %c0_i32_0 = arith.constant 0 : i32
    %c0_i32_1 = arith.constant 0 : i32
    return %c0_i32, %c0_i32_0 : i32, i32
  }
  func.func @transform_12(%arg0: i32) -> (i32, i32) {
    %c0_i32 = arith.constant 0 : i32
    %c0_i32_0 = arith.constant 0 : i32
    %c0_i32_1 = arith.constant 0 : i32
    return %c0_i32, %c0_i32_0 : i32, i32
  }
  func.func @transform_13(%arg0: i32) -> (i32, i32) {
    %c0_i32 = arith.constant 0 : i32
    %c0_i32_0 = arith.constant 0 : i32
    %c0_i32_1 = arith.constant 0 : i32
    return %c0_i32, %c0_i32_0 : i32, i32
  }
  func.func @transform_14(%arg0: i32) -> (i32, i32) {
    %c0_i32 = arith.constant 0 : i32
    %c0_i32_0 = arith.constant 0 : i32
    return %arg0, %c0_i32 : i32, i32
  }
}

</mosaic_0001>

<llo_original>
// kernel: tpu_custom_call.1
$region0: #{tpu_custom_call.1}
  #allocation0 [shape = 'u32[]', space=smem, size = 0x4, offset = 0x4, fixed_abs, tag = 'smem constant byte address 0x4 - core index']
  #allocation1 [shape = 'u32[144,128]{1,0:T(1,128)}', space=vmem, size = 0x12000, scoped, tag = 'internal scratch']
  %s0 = inlined_call_operand.vmem [shape: f32[16,32], index: 0, kind: input, shape index: {}]
  %s1 = inlined_call_operand.vmem [shape: f32[2,8,8], index: 1, kind: input, shape index: {}]
  %s2 = inlined_call_operand.vmem [shape: f32[1,32], index: 2, kind: input, shape index: {}]
  %s3 = inlined_call_operand.vmem [shape: f32[1,32], index: 3, kind: input, shape index: {}]
  %s4 = inlined_call_operand.vmem [shape: bf16[32,32], index: 4, kind: input, shape index: {}]
  %s5 = inlined_call_operand.vmem [shape: bf16[32,32], index: 5, kind: input, shape index: {}]
  %s6 = inlined_call_operand.vmem [shape: bf16[32,32], index: 6, kind: input, shape index: {}]
  %s7 = inlined_call_operand.hbm [shape: bf16[4,8,32], index: 7, kind: input, shape index: {}]
  %s8 = inlined_call_operand.hbm [shape: bf16[32,128], index: 8, kind: input, shape index: {}]
  %s9 = inlined_call_operand.vmem [shape: f32[1,128], index: 9, kind: input, shape index: {}]
  %s10 = inlined_call_operand.vmem [shape: bf16[128,32], index: 10, kind: input, shape index: {}]
  %s11 = inlined_call_operand.vmem [shape: f32[1,32], index: 11, kind: input, shape index: {}]
  %s12 = inlined_call_operand.vmem [shape: f32[1,32], index: 12, kind: input, shape index: {}]
  %s13 = inlined_call_operand.vmem [shape: f32[1,32], index: 13, kind: input, shape index: {}]
  %s14 = inlined_call_operand.hbm [shape: f32[16,32], index: 14, kind: output, shape index: {}]
  %s15 = sld [smem:[#allocation0]]
  $region74: #{tpu_custom_call.1} parent=0
    _
  %s17 = ssub.s32 1, %s15
  %s18 = scalar_select 0, %s17, %s15
  $region1: #{tpu_custom_call.1} parent=0
    #allocation2 [shape = 'u8[8192]{0}', space=vmem, size = 0x2000, scoped, tag = 'input window, operand 7, single buffered']
    #allocation3 [shape = 's32[1]{0}', space=sflag, size = 0x4, scoped, tag = 'scoped memory for tpu_custom_call.1']
    #allocation4 [shape = 's32[1]{0}', space=sflag, size = 0x4, scoped, tag = 'scoped memory for tpu_custom_call.1']
    #allocation5 [shape = 'u8[8192]{0}', space=vmem, size = 0x2000, scoped, tag = 'input window, operand 8, single buffered']
    #allocation6 [shape = 's32[1]{0}', space=sflag, size = 0x4, scoped, tag = 'scoped memory for tpu_custom_call.1']
    #allocation7 [shape = 'u8[8192]{0}', space=vmem, size = 0x2000, scoped, tag = 'output window, operand 0, single buffered']
    %19 = vsyncpa [#allocation3], 0
    %20 = vsyncpa [#allocation6], 0
    %21 = vsyncpa [#allocation4], 0
    // Predicated region
    $region2: #{tpu_custom_call.1} parent=1 // pred_check
      _
    $region3: #{tpu_custom_call.1} parent=1 // pred_check_branch
      %23 = sbr.rel (0) target = $region5
    $region4: #{tpu_custom_call.1} parent=1 // pred_region
      _
    $region5: #{tpu_custom_call.1} parent=1 // pred_fallthru
      _
    // Predicated region
    $region6: #{tpu_custom_call.1} parent=1 // pred_check
      _
    $region7: #{tpu_custom_call.1} parent=1 // pred_check_branch
      %25 = sbr.rel (0) target = $region9
    $region8: #{tpu_custom_call.1} parent=1 // pred_region
      _
    $region9: #{tpu_custom_call.1} parent=1 // pred_fallthru
      _
    // Predicated region
    $region10: #{tpu_custom_call.1} parent=1 // pred_check
      _
    $region11: #{tpu_custom_call.1} parent=1 // pred_check_branch
      %27 = sbr.rel (0) target = $region13
    $region12: #{tpu_custom_call.1} parent=1 // pred_region
      _
    $region13: #{tpu_custom_call.1} parent=1 // pred_fallthru
      _
    // Predicated region
    $region14: #{tpu_custom_call.1} parent=1 // pred_check
      _
    $region15: #{tpu_custom_call.1} parent=1 // pred_check_branch
      %29 = sbr.rel (0) target = $region17
    $region16: #{tpu_custom_call.1} parent=1 // pred_region
      _
    $region17: #{tpu_custom_call.1} parent=1 // pred_fallthru
      _
    // Predicated region
    $region18: #{tpu_custom_call.1} parent=1 // pred_check
      _
    $region19: #{tpu_custom_call.1} parent=1 // pred_check_branch
      %31 = sbr.rel (0) target = $region21
    $region20: #{tpu_custom_call.1} parent=1 // pred_region
      _
    $region21: #{tpu_custom_call.1} parent=1 // pred_fallthru
      _
    // Predicated region
    $region22: #{tpu_custom_call.1} parent=1 // pred_check
      _
    $region23: #{tpu_custom_call.1} parent=1 // pred_check_branch
      %33 = sbr.rel (0) target = $region25
    $region24: #{tpu_custom_call.1} parent=1 // pred_region
      _
    $region25: #{tpu_custom_call.1} parent=1 // pred_fallthru
      _
    // Predicated region
    $region26: #{tpu_custom_call.1} parent=1 // pred_check
      _
    $region27: #{tpu_custom_call.1} parent=1 // pred_check_branch
      %35 = sbr.rel (0) target = $region29
    $region28: #{tpu_custom_call.1} parent=1 // pred_region
      _
    $region29: #{tpu_custom_call.1} parent=1 // pred_fallthru
      _
    // Predicated region
    $region30: #{tpu_custom_call.1} parent=1 // pred_check
      _
    $region31: #{tpu_custom_call.1} parent=1 // pred_check_branch
      %37 = sbr.rel (0) target = $region33
    $region32: #{tpu_custom_call.1} parent=1 // pred_region
      %s39 = ssub.s32 256, 256
      %40 = vsyncadd [#allocation3], %s39
      %s41 = sshll.u32 [#allocation2], 4
      %s42 = int_to_ptr.vmem [resolvable:$true] %s41
      %47 = dma.hbm_to_vmem [thread:$0]  %s7, 256, %s42, [#allocation3], 64, 64, 4
    $region33: #{tpu_custom_call.1} parent=1 // pred_fallthru
      _
    // Predicated region
    $region34: #{tpu_custom_call.1} parent=1 // pred_check
      _
    $region35: #{tpu_custom_call.1} parent=1 // pred_check_branch
      %49 = sbr.rel (0) target = $region37
    $region36: #{tpu_custom_call.1} parent=1 // pred_region
      %s51 = ssub.s32 256, 256
      %52 = vsyncadd [#allocation6], %s51
      %s53 = sshll.u32 [#allocation5], 4
      %s54 = int_to_ptr.vmem [resolvable:$true] %s53
      %59 = dma.hbm_to_vmem [thread:$0]  %s8, 256, %s54, [#allocation6], 64, 64, 4
    $region37: #{tpu_custom_call.1} parent=1 // pred_fallthru
      _
    // Predicated region
    $region38: #{tpu_custom_call.1} parent=1 // pred_check
      _
    $region39: #{tpu_custom_call.1} parent=1 // pred_check_branch
      %61 = sbr.rel (0) target = $region41
    $region40: #{tpu_custom_call.1} parent=1 // pred_region
      _
    $region41: #{tpu_custom_call.1} parent=1 // pred_fallthru
      _
    // Predicated region
    $region42: #{tpu_custom_call.1} parent=1 // pred_check
      _
    $region43: #{tpu_custom_call.1} parent=1 // pred_check_branch
      %63 = sbr.rel (0) target = $region45
    $region44: #{tpu_custom_call.1} parent=1 // pred_region
      _
    $region45: #{tpu_custom_call.1} parent=1 // pred_fallthru
      _
    // Predicated region
    $region46: #{tpu_custom_call.1} parent=1 // pred_check
      _
    $region47: #{tpu_custom_call.1} parent=1 // pred_check_branch
      %65 = sbr.rel (0) target = $region49
    $region48: #{tpu_custom_call.1} parent=1 // pred_region
      _
    $region49: #{tpu_custom_call.1} parent=1 // pred_fallthru
      _
    // Predicated region
    $region50: #{tpu_custom_call.1} parent=1 // pred_check
      _
    $region51: #{tpu_custom_call.1} parent=1 // pred_check_branch
      %67 = sbr.rel (0) target = $region53
    $region52: #{tpu_custom_call.1} parent=1 // pred_region
      _
    $region53: #{tpu_custom_call.1} parent=1 // pred_fallthru
      _
    // Predicated region
    $region54: #{tpu_custom_call.1} parent=1 // pred_check
      _
    $region55: #{tpu_custom_call.1} parent=1 // pred_check_branch
      %69 = sbr.rel (0) target = $region57
    $region56: #{tpu_custom_call.1} parent=1 // pred_region
      _
    $region57: #{tpu_custom_call.1} parent=1 // pred_fallthru
      _
    // Predicated region
    $region58: #{tpu_custom_call.1} parent=1 // pred_check
      _
    $region59: #{tpu_custom_call.1} parent=1 // pred_check_branch
      %71 = sbr.rel (0) target = $region61
    $region60: #{tpu_custom_call.1} parent=1 // pred_region
      %72 = dma.done [#allocation3], 256
    $region61: #{tpu_custom_call.1} parent=1 // pred_fallthru
      _
    // Predicated region
    $region62: #{tpu_custom_call.1} parent=1 // pred_check
      _
    $region63: #{tpu_custom_call.1} parent=1 // pred_check_branch
      %74 = sbr.rel (0) target = $region65
    $region64: #{tpu_custom_call.1} parent=1 // pred_region
      %75 = dma.done [#allocation6], 256
    $region65: #{tpu_custom_call.1} parent=1 // pred_fallthru
      _
    %v77 = vld [vmem:[%s0] sm:$0xff]
    %v78 = vld [vmem:[%s0 + $0x8] sm:$0xff]
    %v79 = vld [vmem:[%s2] sm:$0x1]
    %v80 = vld [vmem:[%s3] sm:$0x1]
    %vm81 = vcmask 261120
    %v82 = vsel %vm81, %v77, 0.0
    %83 = vadd.xlane.f32.xlu0 %v82
    %v84 = vpop.xlane.xlu0 %83
    %v85 = vsel %vm81, %v78, 0.0
    %86 = vadd.xlane.f32.xlu0 %v85
    %v87 = vpop.xlane.xlu0 %86
    %v88 = vrcp.pop 32.0
    %v89 = vmul.f32 %v84, %v88
    %v90 = vmul.f32 %v87, %v88
    %v91 = vsub.f32 %v77, %v89
    %v92 = vsub.f32 %v78, %v90
    %v93 = vmul.f32 %v91, %v91
    %v94 = vmul.f32 %v92, %v92
    %v95 = vsel %vm81, %v93, 0.0
    %96 = vadd.xlane.f32.xlu0 %v95
    %v97 = vpop.xlane.xlu0 %96
    %v98 = vsel %vm81, %v94, 0.0
    %99 = vadd.xlane.f32.xlu0 %v98
    %v100 = vpop.xlane.xlu0 %99
    %v101 = vmul.f32 %v97, %v88
    %v102 = vmul.f32 %v100, %v88
    %v103 = vadd.f32 %v101, 1e-05
    %v104 = vadd.f32 %v102, 1e-05
    %v105 = vrsqrt.pop %v103
    %v106 = vrsqrt.pop %v104
    %v107 = vmul.f32 %v91, %v105
    %v108 = vmul.f32 %v92, %v106
    %v110 = vlaneseq
    %v111 = vshrl.u32 %v110, 7
    %v112 = vsub.s32 0, %v111
    %v113 = vrot.slane %v79, %v112
    %v115 = vmul.f32 %v107, %v113
    %v116 = vmul.f32 %v108, %v113
    %v118 = vlaneseq
    %v119 = vshrl.u32 %v118, 7
    %v120 = vsub.s32 0, %v119
    %v121 = vrot.slane %v80, %v120
    %v123 = vadd.f32 %v115, %v121
    %v124 = vadd.f32 %v116, %v121
    %v125 = vpack.c.bf16 %v124, %v123
    %v126 = vld [vmem:[%s4] sm:$0xf]
    %v127 = vld [vmem:[%s4 + $0x4] sm:$0xf]
    %v128 = vld [vmem:[%s4 + $0x8] sm:$0xf]
    %v129 = vld [vmem:[%s4 + $0xc] sm:$0xf]
    %v134 = vunpack.c.l.b16 %v126
    %v135 = vunpack.c.l.b16 %v127
    %v136 = vunpack.c.l.b16 %v128
    %v137 = vunpack.c.l.b16 %v129
    %v138 = vpack.c.b16 %v135, %v134
    %v139 = vpack.c.b16 %v137, %v136
    %v143 = vsel %vm81, %v125, 0
    %145 = vmatprep.subr.bf16.mxu0 0
    %146 = vmatpush1.bf16.msra.mxu0 %v138
    %147 = vmatprep.subr.bf16.mxu0 0
    %148 = vmatpush1.bf16.msra.mxu0 %v139
    %149 = vmatprep.subr.bf16.mxu0 0
    %150 = vmatpush1.bf16.msra.mxu0 0
    %151 = vmatprep.subr.bf16.mxu0 0
    %152 = vmatpush1.bf16.msra.mxu0 0
    %153 = vmatprep.subr.bf16.mxu0 0
    %154 = vmatpush1.bf16.msra.mxu0 0
    %155 = vmatprep.subr.bf16.mxu0 0
    %156 = vmatpush1.bf16.msra.mxu0 0
    %157 = vmatprep.subr.bf16.mxu0 0
    %158 = vmatpush1.bf16.msra.mxu0 0
    %159 = vmatprep.subr.bf16.mxu0 0
    %160 = vmatpush1.bf16.msra.mxu0 0
    %161 = vmatprep.subr.bf16.mxu0 0
    %162 = vmatpush1.bf16.msra.mxu0 0
    %163 = vmatprep.subr.bf16.mxu0 0
    %164 = vmatpush1.bf16.msra.mxu0 0
    %165 = vmatprep.subr.bf16.mxu0 0
    %166 = vmatpush1.bf16.msra.mxu0 0
    %167 = vmatprep.subr.bf16.mxu0 0
    %168 = vmatpush1.bf16.msra.mxu0 0
    %169 = vmatprep.subr.bf16.mxu0 0
    %170 = vmatpush1.bf16.msra.mxu0 0
    %171 = vmatprep.subr.bf16.mxu0 0
    %172 = vmatpush1.bf16.msra.mxu0 0
    %173 = vmatprep.subr.bf16.mxu0 0
    %174 = vmatpush1.bf16.msra.mxu0 0
    %175 = vmatprep.subr.bf16.mxu0 0
    %176 = vmatpush1.bf16.msra.mxu0 0
    %177 = vmatprep.mubr.bf16.mxu0 0
    %178 = vmatmul.mubr.bf16.gmra.mrb[0].mxu0 %v143
    %v179 = vpop.f32.mrb[0].mxu0
    %v180 = vadd.f32 0.0, %v179
    %v181 = vpop.f32.mrb[0].mxu0
    %v182 = vpop.f32.mrb[0].mxu0
    %v183 = vadd.f32 0.0, %v182
    %v184 = vpop.f32.mrb[0].mxu0
    %185 = vdwg.mxu0
    %v186 = vld [vmem:[%s5] sm:$0xf]
    %v187 = vld [vmem:[%s5 + $0x4] sm:$0xf]
    %v188 = vld [vmem:[%s5 + $0x8] sm:$0xf]
    %v189 = vld [vmem:[%s5 + $0xc] sm:$0xf]
    %v194 = vunpack.c.l.b16 %v186
    %v195 = vunpack.c.l.b16 %v187
    %v196 = vunpack.c.l.b16 %v188
    %v197 = vunpack.c.l.b16 %v189
    %v198 = vpack.c.b16 %v195, %v194
    %v199 = vpack.c.b16 %v197, %v196
    %202 = vmatprep.subr.bf16.mxu0 0
    %203 = vmatpush1.bf16.msra.mxu0 %v198
    %204 = vmatprep.subr.bf16.mxu0 0
    %205 = vmatpush1.bf16.msra.mxu0 %v199
    %206 = vmatprep.subr.bf16.mxu0 0
    %207 = vmatpush1.bf16.msra.mxu0 0
    %208 = vmatprep.subr.bf16.mxu0 0
    %209 = vmatpush1.bf16.msra.mxu0 0
    %210 = vmatprep.subr.bf16.mxu0 0
    %211 = vmatpush1.bf16.msra.mxu0 0
    %212 = vmatprep.subr.bf16.mxu0 0
    %213 = vmatpush1.bf16.msra.mxu0 0
    %214 = vmatprep.subr.bf16.mxu0 0
    %215 = vmatpush1.bf16.msra.mxu0 0
    %216 = vmatprep.subr.bf16.mxu0 0
    %217 = vmatpush1.bf16.msra.mxu0 0
    %218 = vmatprep.subr.bf16.mxu0 0
    %219 = vmatpush1.bf16.msra.mxu0 0
    %220 = vmatprep.subr.bf16.mxu0 0
    %221 = vmatpush1.bf16.msra.mxu0 0
    %222 = vmatprep.subr.bf16.mxu0 0
    %223 = vmatpush1.bf16.msra.mxu0 0
    %224 = vmatprep.subr.bf16.mxu0 0
    %225 = vmatpush1.bf16.msra.mxu0 0
    %226 = vmatprep.subr.bf16.mxu0 0
    %227 = vmatpush1.bf16.msra.mxu0 0
    %228 = vmatprep.subr.bf16.mxu0 0
    %229 = vmatpush1.bf16.msra.mxu0 0
    %230 = vmatprep.subr.bf16.mxu0 0
    %231 = vmatpush1.bf16.msra.mxu0 0
    %232 = vmatprep.subr.bf16.mxu0 0
    %233 = vmatpush1.bf16.msra.mxu0 0
    %234 = vmatprep.mubr.bf16.mxu0 0
    %235 = vmatmul.mubr.bf16.gmra.mrb[0].mxu0 %v143
    %v236 = vpop.f32.mrb[0].mxu0
    %v237 = vadd.f32 0.0, %v236
    %v238 = vpop.f32.mrb[0].mxu0
    %v239 = vpop.f32.mrb[0].mxu0
    %v240 = vadd.f32 0.0, %v239
    %v241 = vpop.f32.mrb[0].mxu0
    %242 = vdwg.mxu0
    %v243 = vld [vmem:[%s6] sm:$0xf]
    %v244 = vld [vmem:[%s6 + $0x4] sm:$0xf]
    %v245 = vld [vmem:[%s6 + $0x8] sm:$0xf]
    %v246 = vld [vmem:[%s6 + $0xc] sm:$0xf]
    %v251 = vunpack.c.l.b16 %v243
    %v252 = vunpack.c.l.b16 %v244
    %v253 = vunpack.c.l.b16 %v245
    %v254 = vunpack.c.l.b16 %v246
    %v255 = vpack.c.b16 %v252, %v251
    %v256 = vpack.c.b16 %v254, %v253
    %259 = vmatprep.subr.bf16.mxu0 0
    %260 = vmatpush1.bf16.msra.mxu0 %v255
    %261 = vmatprep.subr.bf16.mxu0 0
    %262 = vmatpush1.bf16.msra.mxu0 %v256
    %263 = vmatprep.subr.bf16.mxu0 0
    %264 = vmatpush1.bf16.msra.mxu0 0
    %265 = vmatprep.subr.bf16.mxu0 0
    %266 = vmatpush1.bf16.msra.mxu0 0
    %267 = vmatprep.subr.bf16.mxu0 0
    %268 = vmatpush1.bf16.msra.mxu0 0
    %269 = vmatprep.subr.bf16.mxu0 0
    %270 = vmatpush1.bf16.msra.mxu0 0
    %271 = vmatprep.subr.bf16.mxu0 0
    %272 = vmatpush1.bf16.msra.mxu0 0
    %273 = vmatprep.subr.bf16.mxu0 0
    %274 = vmatpush1.bf16.msra.mxu0 0
    %275 = vmatprep.subr.bf16.mxu0 0
    %276 = vmatpush1.bf16.msra.mxu0 0
    %277 = vmatprep.subr.bf16.mxu0 0
    %278 = vmatpush1.bf16.msra.mxu0 0
    %279 = vmatprep.subr.bf16.mxu0 0
    %280 = vmatpush1.bf16.msra.mxu0 0
    %281 = vmatprep.subr.bf16.mxu0 0
    %282 = vmatpush1.bf16.msra.mxu0 0
    %283 = vmatprep.subr.bf16.mxu0 0
    %284 = vmatpush1.bf16.msra.mxu0 0
    %285 = vmatprep.subr.bf16.mxu0 0
    %286 = vmatpush1.bf16.msra.mxu0 0
    %287 = vmatprep.subr.bf16.mxu0 0
    %288 = vmatpush1.bf16.msra.mxu0 0
    %289 = vmatprep.subr.bf16.mxu0 0
    %290 = vmatpush1.bf16.msra.mxu0 0
    %291 = vmatprep.mubr.bf16.mxu0 0
    %292 = vmatmul.mubr.bf16.gmra.mrb[0].mxu0 %v143
    %v293 = vpop.f32.mrb[0].mxu0
    %v294 = vadd.f32 0.0, %v293
    %v295 = vpop.f32.mrb[0].mxu0
    %v296 = vpop.f32.mrb[0].mxu0
    %v297 = vadd.f32 0.0, %v296
    %v298 = vpop.f32.mrb[0].mxu0
    %299 = vdwg.mxu0
    %302 = vrot.lane.b32.xlu0 %v180, 120
    %v303 = vpop.permute.xlu0 %302
    %304 = vrot.lane.b32.xlu0 %v183, 120
    %v305 = vpop.permute.xlu0 %304
    %308 = vrot.lane.b32.xlu0 %v180, 112
    %v309 = vpop.permute.xlu0 %308
    %310 = vrot.lane.b32.xlu0 %v183, 112
    %v311 = vpop.permute.xlu0 %310
    %314 = vrot.lane.b32.xlu0 %v180, 104
    %v315 = vpop.permute.xlu0 %314
    %316 = vrot.lane.b32.xlu0 %v183, 104
    %v317 = vpop.permute.xlu0 %316
    %v320 = vpack.c.bf16 %v180, %v180
    %v321 = vpack.c.bf16 %v183, %v183
    %v322 = vpack.c.bf16 %v303, %v303
    %v323 = vpack.c.bf16 %v305, %v305
    %v324 = vpack.c.bf16 %v309, %v309
    %v325 = vpack.c.bf16 %v311, %v311
    %v326 = vpack.c.bf16 %v315, %v315
    %v327 = vpack.c.bf16 %v317, %v317
    %330 = vrot.lane.b32.xlu0 %v237, 120
    %v331 = vpop.permute.xlu0 %330
    %332 = vrot.lane.b32.xlu0 %v240, 120
    %v333 = vpop.permute.xlu0 %332
    %336 = vrot.lane.b32.xlu0 %v237, 112
    %v337 = vpop.permute.xlu0 %336
    %338 = vrot.lane.b32.xlu0 %v240, 112
    %v339 = vpop.permute.xlu0 %338
    %342 = vrot.lane.b32.xlu0 %v237, 104
    %v343 = vpop.permute.xlu0 %342
    %344 = vrot.lane.b32.xlu0 %v240, 104
    %v345 = vpop.permute.xlu0 %344
    %v348 = vpack.c.bf16 %v237, %v237
    %v349 = vpack.c.bf16 %v240, %v240
    %v350 = vpack.c.bf16 %v331, %v331
    %v351 = vpack.c.bf16 %v333, %v333
    %v352 = vpack.c.bf16 %v337, %v337
    %v353 = vpack.c.bf16 %v339, %v339
    %v354 = vpack.c.bf16 %v343, %v343
    %v355 = vpack.c.bf16 %v345, %v345
    %358 = vrot.lane.b32.xlu0 %v294, 120
    %v359 = vpop.permute.xlu0 %358
    %360 = vrot.lane.b32.xlu0 %v297, 120
    %v361 = vpop.permute.xlu0 %360
    %364 = vrot.lane.b32.xlu0 %v294, 112
    %v365 = vpop.permute.xlu0 %364
    %366 = vrot.lane.b32.xlu0 %v297, 112
    %v367 = vpop.permute.xlu0 %366
    %370 = vrot.lane.b32.xlu0 %v294, 104
    %v371 = vpop.permute.xlu0 %370
    %372 = vrot.lane.b32.xlu0 %v297, 104
    %v373 = vpop.permute.xlu0 %372
    %v376 = vpack.c.bf16 %v294, %v294
    %v377 = vpack.c.bf16 %v297, %v297
    %v378 = vpack.c.bf16 %v359, %v359
    %v379 = vpack.c.bf16 %v361, %v361
    %v380 = vpack.c.bf16 %v365, %v365
    %v381 = vpack.c.bf16 %v367, %v367
    %v382 = vpack.c.bf16 %v371, %v371
    %v383 = vpack.c.bf16 %v373, %v373
    %v384 = vld [vmem:[%s1] sm:$0xff]
    %v385 = vld [vmem:[%s1 + $0x8] sm:$0xff]
    %vm386 = vcmask 64512
    %v388 = vsel %vm386, %v320, 0
    %v391 = vsel %vm386, %v348, 0
    %393 = vmatprep.subr.bf16.mxu0 0
    %394 = vmatpush1.bf16.xpose.msra.mxu0 %v391
    %395 = vmatprep.subr.bf16.mxu0 0
    %396 = vmatpush1.bf16.xpose.msra.mxu0 0
    %397 = vmatprep.subr.bf16.mxu0 0
    %398 = vmatpush1.bf16.xpose.msra.mxu0 0
    %399 = vmatprep.subr.bf16.mxu0 0
    %400 = vmatpush1.bf16.xpose.msra.mxu0 0
    %401 = vmatprep.subr.bf16.mxu0 0
    %402 = vmatpush1.bf16.xpose.msra.mxu0 0
    %403 = vmatprep.subr.bf16.mxu0 0
    %404 = vmatpush1.bf16.xpose.msra.mxu0 0
    %405 = vmatprep.subr.bf16.mxu0 0
    %406 = vmatpush1.bf16.xpose.msra.mxu0 0
    %407 = vmatprep.subr.bf16.mxu0 0
    %408 = vmatpush1.bf16.xpose.msra.mxu0 0
    %409 = vmatprep.subr.bf16.mxu0 0
    %410 = vmatpush1.bf16.xpose.msra.mxu0 0
    %411 = vmatprep.subr.bf16.mxu0 0
    %412 = vmatpush1.bf16.xpose.msra.mxu0 0
    %413 = vmatprep.subr.bf16.mxu0 0
    %414 = vmatpush1.bf16.xpose.msra.mxu0 0
    %415 = vmatprep.subr.bf16.mxu0 0
    %416 = vmatpush1.bf16.xpose.msra.mxu0 0
    %417 = vmatprep.subr.bf16.mxu0 0
    %418 = vmatpush1.bf16.xpose.msra.mxu0 0
    %419 = vmatprep.subr.bf16.mxu0 0
    %420 = vmatpush1.bf16.xpose.msra.mxu0 0
    %421 = vmatprep.subr.bf16.mxu0 0
    %422 = vmatpush1.bf16.xpose.msra.mxu0 0
    %423 = vmatprep.subr.bf16.mxu0 0
    %424 = vmatpush1.bf16.xpose.msra.mxu0 0
    %425 = vmatprep.mubr.bf16.mxu0 0
    %426 = vmatmul.mubr.bf16.gmra.mrb[0].mxu0 %v388
    %v427 = vpop.f32.mrb[0].mxu0
    %v428 = vadd.f32 0.0, %v427
    %v429 = vpop.f32.mrb[0].mxu0
    %v430 = vpop.f32.mrb[0].mxu0
    %v431 = vpop.f32.mrb[0].mxu0
    %432 = vdwg.mxu0
    %v434 = vsel %vm386, %v321, 0
    %v437 = vsel %vm386, %v349, 0
    %439 = vmatprep.subr.bf16.mxu0 0
    %440 = vmatpush1.bf16.xpose.msra.mxu0 %v437
    %441 = vmatprep.subr.bf16.mxu0 0
    %442 = vmatpush1.bf16.xpose.msra.mxu0 0
    %443 = vmatprep.subr.bf16.mxu0 0
    %444 = vmatpush1.bf16.xpose.msra.mxu0 0
    %445 = vmatprep.subr.bf16.mxu0 0
    %446 = vmatpush1.bf16.xpose.msra.mxu0 0
    %447 = vmatprep.subr.bf16.mxu0 0
    %448 = vmatpush1.bf16.xpose.msra.mxu0 0
    %449 = vmatprep.subr.bf16.mxu0 0
    %450 = vmatpush1.bf16.xpose.msra.mxu0 0
    %451 = vmatprep.subr.bf16.mxu0 0
    %452 = vmatpush1.bf16.xpose.msra.mxu0 0
    %453 = vmatprep.subr.bf16.mxu0 0
    %454 = vmatpush1.bf16.xpose.msra.mxu0 0
    %455 = vmatprep.subr.bf16.mxu0 0
    %456 = vmatpush1.bf16.xpose.msra.mxu0 0
    %457 = vmatprep.subr.bf16.mxu0 0
    %458 = vmatpush1.bf16.xpose.msra.mxu0 0
    %459 = vmatprep.subr.bf16.mxu0 0
    %460 = vmatpush1.bf16.xpose.msra.mxu0 0
    %461 = vmatprep.subr.bf16.mxu0 0
    %462 = vmatpush1.bf16.xpose.msra.mxu0 0
    %463 = vmatprep.subr.bf16.mxu0 0
    %464 = vmatpush1.bf16.xpose.msra.mxu0 0
    %465 = vmatprep.subr.bf16.mxu0 0
    %466 = vmatpush1.bf16.xpose.msra.mxu0 0
    %467 = vmatprep.subr.bf16.mxu0 0
    %468 = vmatpush1.bf16.xpose.msra.mxu0 0
    %469 = vmatprep.subr.bf16.mxu0 0
    %470 = vmatpush1.bf16.xpose.msra.mxu0 0
    %471 = vmatprep.mubr.bf16.mxu0 0
    %472 = vmatmul.mubr.bf16.gmra.mrb[0].mxu0 %v434
    %v473 = vpop.f32.mrb[0].mxu0
    %v474 = vadd.f32 0.0, %v473
    %v475 = vpop.f32.mrb[0].mxu0
    %v476 = vpop.f32.mrb[0].mxu0
    %v477 = vpop.f32.mrb[0].mxu0
    %478 = vdwg.mxu0
    %v480 = vsel %vm386, %v322, 0
    %v483 = vsel %vm386, %v350, 0
    %485 = vmatprep.subr.bf16.mxu0 0
    %486 = vmatpush1.bf16.xpose.msra.mxu0 %v483
    %487 = vmatprep.subr.bf16.mxu0 0
    %488 = vmatpush1.bf16.xpose.msra.mxu0 0
    %489 = vmatprep.subr.bf16.mxu0 0
    %490 = vmatpush1.bf16.xpose.msra.mxu0 0
    %491 = vmatprep.subr.bf16.mxu0 0
    %492 = vmatpush1.bf16.xpose.msra.mxu0 0
    %493 = vmatprep.subr.bf16.mxu0 0
    %494 = vmatpush1.bf16.xpose.msra.mxu0 0
    %495 = vmatprep.subr.bf16.mxu0 0
    %496 = vmatpush1.bf16.xpose.msra.mxu0 0
    %497 = vmatprep.subr.bf16.mxu0 0
    %498 = vmatpush1.bf16.xpose.msra.mxu0 0
    %499 = vmatprep.subr.bf16.mxu0 0
    %500 = vmatpush1.bf16.xpose.msra.mxu0 0
    %501 = vmatprep.subr.bf16.mxu0 0
    %502 = vmatpush1.bf16.xpose.msra.mxu0 0
    %503 = vmatprep.subr.bf16.mxu0 0
    %504 = vmatpush1.bf16.xpose.msra.mxu0 0
    %505 = vmatprep.subr.bf16.mxu0 0
    %506 = vmatpush1.bf16.xpose.msra.mxu0 0
    %507 = vmatprep.subr.bf16.mxu0 0
    %508 = vmatpush1.bf16.xpose.msra.mxu0 0
    %509 = vmatprep.subr.bf16.mxu0 0
    %510 = vmatpush1.bf16.xpose.msra.mxu0 0
    %511 = vmatprep.subr.bf16.mxu0 0
    %512 = vmatpush1.bf16.xpose.msra.mxu0 0
    %513 = vmatprep.subr.bf16.mxu0 0
    %514 = vmatpush1.bf16.xpose.msra.mxu0 0
    %515 = vmatprep.subr.bf16.mxu0 0
    %516 = vmatpush1.bf16.xpose.msra.mxu0 0
    %517 = vmatprep.mubr.bf16.mxu0 0
    %518 = vmatmul.mubr.bf16.gmra.mrb[0].mxu0 %v480
    %v519 = vpop.f32.mrb[0].mxu0
    %v520 = vadd.f32 0.0, %v519
    %v521 = vpop.f32.mrb[0].mxu0
    %v522 = vpop.f32.mrb[0].mxu0
    %v523 = vpop.f32.mrb[0].mxu0
    %524 = vdwg.mxu0
    %v526 = vsel %vm386, %v323, 0
    %v529 = vsel %vm386, %v351, 0
    %531 = vmatprep.subr.bf16.mxu0 0
    %532 = vmatpush1.bf16.xpose.msra.mxu0 %v529
    %533 = vmatprep.subr.bf16.mxu0 0
    %534 = vmatpush1.bf16.xpose.msra.mxu0 0
    %535 = vmatprep.subr.bf16.mxu0 0
    %536 = vmatpush1.bf16.xpose.msra.mxu0 0
    %537 = vmatprep.subr.bf16.mxu0 0
    %538 = vmatpush1.bf16.xpose.msra.mxu0 0
    %539 = vmatprep.subr.bf16.mxu0 0
    %540 = vmatpush1.bf16.xpose.msra.mxu0 0
    %541 = vmatprep.subr.bf16.mxu0 0
    %542 = vmatpush1.bf16.xpose.msra.mxu0 0
    %543 = vmatprep.subr.bf16.mxu0 0
    %544 = vmatpush1.bf16.xpose.msra.mxu0 0
    %545 = vmatprep.subr.bf16.mxu0 0
    %546 = vmatpush1.bf16.xpose.msra.mxu0 0
    %547 = vmatprep.subr.bf16.mxu0 0
    %548 = vmatpush1.bf16.xpose.msra.mxu0 0
    %549 = vmatprep.subr.bf16.mxu0 0
    %550 = vmatpush1.bf16.xpose.msra.mxu0 0
    %551 = vmatprep.subr.bf16.mxu0 0
    %552 = vmatpush1.bf16.xpose.msra.mxu0 0
    %553 = vmatprep.subr.bf16.mxu0 0
    %554 = vmatpush1.bf16.xpose.msra.mxu0 0
    %555 = vmatprep.subr.bf16.mxu0 0
    %556 = vmatpush1.bf16.xpose.msra.mxu0 0
    %557 = vmatprep.subr.bf16.mxu0 0
    %558 = vmatpush1.bf16.xpose.msra.mxu0 0
    %559 = vmatprep.subr.bf16.mxu0 0
    %560 = vmatpush1.bf16.xpose.msra.mxu0 0
    %561 = vmatprep.subr.bf16.mxu0 0
    %562 = vmatpush1.bf16.xpose.msra.mxu0 0
    %563 = vmatprep.mubr.bf16.mxu0 0
    %564 = vmatmul.mubr.bf16.gmra.mrb[0].mxu0 %v526
    %v565 = vpop.f32.mrb[0].mxu0
    %v566 = vadd.f32 0.0, %v565
    %v567 = vpop.f32.mrb[0].mxu0
    %v568 = vpop.f32.mrb[0].mxu0
    %v569 = vpop.f32.mrb[0].mxu0
    %570 = vdwg.mxu0
    %v572 = vsel %vm386, %v324, 0
    %v575 = vsel %vm386, %v352, 0
    %577 = vmatprep.subr.bf16.mxu0 0
    %578 = vmatpush1.bf16.xpose.msra.mxu0 %v575
    %579 = vmatprep.subr.bf16.mxu0 0
    %580 = vmatpush1.bf16.xpose.msra.mxu0 0
    %581 = vmatprep.subr.bf16.mxu0 0
    %582 = vmatpush1.bf16.xpose.msra.mxu0 0
    %583 = vmatprep.subr.bf16.mxu0 0
    %584 = vmatpush1.bf16.xpose.msra.mxu0 0
    %585 = vmatprep.subr.bf16.mxu0 0
    %586 = vmatpush1.bf16.xpose.msra.mxu0 0
    %587 = vmatprep.subr.bf16.mxu0 0
    %588 = vmatpush1.bf16.xpose.msra.mxu0 0
    %589 = vmatprep.subr.bf16.mxu0 0
    %590 = vmatpush1.bf16.xpose.msra.mxu0 0
    %591 = vmatprep.subr.bf16.mxu0 0
    %592 = vmatpush1.bf16.xpose.msra.mxu0 0
    %593 = vmatprep.subr.bf16.mxu0 0
    %594 = vmatpush1.bf16.xpose.msra.mxu0 0
    %595 = vmatprep.subr.bf16.mxu0 0
    %596 = vmatpush1.bf16.xpose.msra.mxu0 0
    %597 = vmatprep.subr.bf16.mxu0 0
    %598 = vmatpush1.bf16.xpose.msra.mxu0 0
    %599 = vmatprep.subr.bf16.mxu0 0
    %600 = vmatpush1.bf16.xpose.msra.mxu0 0
    %601 = vmatprep.subr.bf16.mxu0 0
    %602 = vmatpush1.bf16.xpose.msra.mxu0 0
    %603 = vmatprep.subr.bf16.mxu0 0
    %604 = vmatpush1.bf16.xpose.msra.mxu0 0
    %605 = vmatprep.subr.bf16.mxu0 0
    %606 = vmatpush1.bf16.xpose.msra.mxu0 0
    %607 = vmatprep.subr.bf16.mxu0 0
    %608 = vmatpush1.bf16.xpose.msra.mxu0 0
    %609 = vmatprep.mubr.bf16.mxu0 0
    %610 = vmatmul.mubr.bf16.gmra.mrb[0].mxu0 %v572
    %v611 = vpop.f32.mrb[0].mxu0
    %v612 = vadd.f32 0.0, %v611
    %v613 = vpop.f32.mrb[0].mxu0
    %v614 = vpop.f32.mrb[0].mxu0
    %v615 = vpop.f32.mrb[0].mxu0
    %616 = vdwg.mxu0
    %v618 = vsel %vm386, %v325, 0
    %v621 = vsel %vm386, %v353, 0
    %623 = vmatprep.subr.bf16.mxu0 0
    %624 = vmatpush1.bf16.xpose.msra.mxu0 %v621
    %625 = vmatprep.subr.bf16.mxu0 0
    %626 = vmatpush1.bf16.xpose.msra.mxu0 0
    %627 = vmatprep.subr.bf16.mxu0 0
    %628 = vmatpush1.bf16.xpose.msra.mxu0 0
    %629 = vmatprep.subr.bf16.mxu0 0
    %630 = vmatpush1.bf16.xpose.msra.mxu0 0
    %631 = vmatprep.subr.bf16.mxu0 0
    %632 = vmatpush1.bf16.xpose.msra.mxu0 0
    %633 = vmatprep.subr.bf16.mxu0 0
    %634 = vmatpush1.bf16.xpose.msra.mxu0 0
    %635 = vmatprep.subr.bf16.mxu0 0
    %636 = vmatpush1.bf16.xpose.msra.mxu0 0
    %637 = vmatprep.subr.bf16.mxu0 0
    %638 = vmatpush1.bf16.xpose.msra.mxu0 0
    %639 = vmatprep.subr.bf16.mxu0 0
    %640 = vmatpush1.bf16.xpose.msra.mxu0 0
    %641 = vmatprep.subr.bf16.mxu0 0
    %642 = vmatpush1.bf16.xpose.msra.mxu0 0
    %643 = vmatprep.subr.bf16.mxu0 0
    %644 = vmatpush1.bf16.xpose.msra.mxu0 0
    %645 = vmatprep.subr.bf16.mxu0 0
    %646 = vmatpush1.bf16.xpose.msra.mxu0 0
    %647 = vmatprep.subr.bf16.mxu0 0
    %648 = vmatpush1.bf16.xpose.msra.mxu0 0
    %649 = vmatprep.subr.bf16.mxu0 0
    %650 = vmatpush1.bf16.xpose.msra.mxu0 0
    %651 = vmatprep.subr.bf16.mxu0 0
    %652 = vmatpush1.bf16.xpose.msra.mxu0 0
    %653 = vmatprep.subr.bf16.mxu0 0
    %654 = vmatpush1.bf16.xpose.msra.mxu0 0
    %655 = vmatprep.mubr.bf16.mxu0 0
    %656 = vmatmul.mubr.bf16.gmra.mrb[0].mxu0 %v618
    %v657 = vpop.f32.mrb[0].mxu0
    %v658 = vadd.f32 0.0, %v657
    %v659 = vpop.f32.mrb[0].mxu0
    %v660 = vpop.f32.mrb[0].mxu0
    %v661 = vpop.f32.mrb[0].mxu0
    %662 = vdwg.mxu0
    %v664 = vsel %vm386, %v326, 0
    %v667 = vsel %vm386, %v354, 0
    %669 = vmatprep.subr.bf16.mxu0 0
    %670 = vmatpush1.bf16.xpose.msra.mxu0 %v667
    %671 = vmatprep.subr.bf16.mxu0 0
    %672 = vmatpush1.bf16.xpose.msra.mxu0 0
    %673 = vmatprep.subr.bf16.mxu0 0
    %674 = vmatpush1.bf16.xpose.msra.mxu0 0
    %675 = vmatprep.subr.bf16.mxu0 0
    %676 = vmatpush1.bf16.xpose.msra.mxu0 0
    %677 = vmatprep.subr.bf16.mxu0 0
    %678 = vmatpush1.bf16.xpose.msra.mxu0 0
    %679 = vmatprep.subr.bf16.mxu0 0
    %680 = vmatpush1.bf16.xpose.msra.mxu0 0
    %681 = vmatprep.subr.bf16.mxu0 0
    %682 = vmatpush1.bf16.xpose.msra.mxu0 0
    %683 = vmatprep.subr.bf16.mxu0 0
    %684 = vmatpush1.bf16.xpose.msra.mxu0 0
    %685 = vmatprep.subr.bf16.mxu0 0
    %686 = vmatpush1.bf16.xpose.msra.mxu0 0
    %687 = vmatprep.subr.bf16.mxu0 0
    %688 = vmatpush1.bf16.xpose.msra.mxu0 0
    %689 = vmatprep.subr.bf16.mxu0 0
    %690 = vmatpush1.bf16.xpose.msra.mxu0 0
    %691 = vmatprep.subr.bf16.mxu0 0
    %692 = vmatpush1.bf16.xpose.msra.mxu0 0
    %693 = vmatprep.subr.bf16.mxu0 0
    %694 = vmatpush1.bf16.xpose.msra.mxu0 0
    %695 = vmatprep.subr.bf16.mxu0 0
    %696 = vmatpush1.bf16.xpose.msra.mxu0 0
    %697 = vmatprep.subr.bf16.mxu0 0
    %698 = vmatpush1.bf16.xpose.msra.mxu0 0
    %699 = vmatprep.subr.bf16.mxu0 0
    %700 = vmatpush1.bf16.xpose.msra.mxu0 0
    %701 = vmatprep.mubr.bf16.mxu0 0
    %702 = vmatmul.mubr.bf16.gmra.mrb[0].mxu0 %v664
    %v703 = vpop.f32.mrb[0].mxu0
    %v704 = vadd.f32 0.0, %v703
    %v705 = vpop.f32.mrb[0].mxu0
    %v706 = vpop.f32.mrb[0].mxu0
    %v707 = vpop.f32.mrb[0].mxu0
    %708 = vdwg.mxu0
    %v710 = vsel %vm386, %v327, 0
    %v713 = vsel %vm386, %v355, 0
    %715 = vmatprep.subr.bf16.mxu0 0
    %716 = vmatpush1.bf16.xpose.msra.mxu0 %v713
    %717 = vmatprep.subr.bf16.mxu0 0
    %718 = vmatpush1.bf16.xpose.msra.mxu0 0
    %719 = vmatprep.subr.bf16.mxu0 0
    %720 = vmatpush1.bf16.xpose.msra.mxu0 0
    %721 = vmatprep.subr.bf16.mxu0 0
    %722 = vmatpush1.bf16.xpose.msra.mxu0 0
    %723 = vmatprep.subr.bf16.mxu0 0
    %724 = vmatpush1.bf16.xpose.msra.mxu0 0
    %725 = vmatprep.subr.bf16.mxu0 0
    %726 = vmatpush1.bf16.xpose.msra.mxu0 0
    %727 = vmatprep.subr.bf16.mxu0 0
    %728 = vmatpush1.bf16.xpose.msra.mxu0 0
    %729 = vmatprep.subr.bf16.mxu0 0
    %730 = vmatpush1.bf16.xpose.msra.mxu0 0
    %731 = vmatprep.subr.bf16.mxu0 0
    %732 = vmatpush1.bf16.xpose.msra.mxu0 0
    %733 = vmatprep.subr.bf16.mxu0 0
    %734 = vmatpush1.bf16.xpose.msra.mxu0 0
    %735 = vmatprep.subr.bf16.mxu0 0
    %736 = vmatpush1.bf16.xpose.msra.mxu0 0
    %737 = vmatprep.subr.bf16.mxu0 0
    %738 = vmatpush1.bf16.xpose.msra.mxu0 0
    %739 = vmatprep.subr.bf16.mxu0 0
    %740 = vmatpush1.bf16.xpose.msra.mxu0 0
    %741 = vmatprep.subr.bf16.mxu0 0
    %742 = vmatpush1.bf16.xpose.msra.mxu0 0
    %743 = vmatprep.subr.bf16.mxu0 0
    %744 = vmatpush1.bf16.xpose.msra.mxu0 0
    %745 = vmatprep.subr.bf16.mxu0 0
    %746 = vmatpush1.bf16.xpose.msra.mxu0 0
    %747 = vmatprep.mubr.bf16.mxu0 0
    %748 = vmatmul.mubr.bf16.gmra.mrb[0].mxu0 %v710
    %v749 = vpop.f32.mrb[0].mxu0
    %v750 = vadd.f32 0.0, %v749
    %v751 = vpop.f32.mrb[0].mxu0
    %v752 = vpop.f32.mrb[0].mxu0
    %v753 = vpop.f32.mrb[0].mxu0
    %754 = vdwg.mxu0
    %v755 = vmul.f32 %v428, 0.35355338
    %v756 = vmul.f32 %v474, 0.35355338
    %v757 = vmul.f32 %v520, 0.35355338
    %v758 = vmul.f32 %v566, 0.35355338
    %v759 = vmul.f32 %v612, 0.35355338
    %v760 = vmul.f32 %v658, 0.35355338
    %v761 = vmul.f32 %v704, 0.35355338
    %v762 = vmul.f32 %v750, 0.35355338
    %v763 = vadd.f32 %v755, %v384
    %v764 = vadd.f32 %v756, %v385
    %v765 = vadd.f32 %v757, %v384
    %v766 = vadd.f32 %v758, %v385
    %v767 = vadd.f32 %v759, %v384
    %v768 = vadd.f32 %v760, %v385
    %v769 = vadd.f32 %v761, %v384
    %v770 = vadd.f32 %v762, %v385
    %v771 = vsel %vm386, %v763, -inf
    %772 = vmax.xlane.f32.xlu0 %v771
    %v773 = vpop.xlane.xlu0 %772
    %v774 = vsel %vm386, %v764, -inf
    %775 = vmax.xlane.f32.xlu0 %v774
    %v776 = vpop.xlane.xlu0 %775
    %v777 = vsel %vm386, %v765, -inf
    %778 = vmax.xlane.f32.xlu0 %v777
    %v779 = vpop.xlane.xlu0 %778
    %v780 = vsel %vm386, %v766, -inf
    %781 = vmax.xlane.f32.xlu0 %v780
    %v782 = vpop.xlane.xlu0 %781
    %v783 = vsel %vm386, %v767, -inf
    %784 = vmax.xlane.f32.xlu0 %v783
    %v785 = vpop.xlane.xlu0 %784
    %v786 = vsel %vm386, %v768, -inf
    %787 = vmax.xlane.f32.xlu0 %v786
    %v788 = vpop.xlane.xlu0 %787
    %v789 = vsel %vm386, %v769, -inf
    %790 = vmax.xlane.f32.xlu0 %v789
    %v791 = vpop.xlane.xlu0 %790
    %v792 = vsel %vm386, %v770, -inf
    %793 = vmax.xlane.f32.xlu0 %v792
    %v794 = vpop.xlane.xlu0 %793
    %v795 = vsub.f32 %v763, %v773
    %v796 = vsub.f32 %v764, %v776
    %v797 = vsub.f32 %v765, %v779
    %v798 = vsub.f32 %v766, %v782
    %v799 = vsub.f32 %v767, %v785
    %v800 = vsub.f32 %v768, %v788
    %v801 = vsub.f32 %v769, %v791
    %v802 = vsub.f32 %v770, %v794
    %v803 = vmul.f32 %v795, 1.442695
    %v804 = vpow.pop %v803
    %v805 = vmul.f32 %v796, 1.442695
    %v806 = vpow.pop %v805
    %v807 = vmul.f32 %v797, 1.442695
    %v808 = vpow.pop %v807
    %v809 = vmul.f32 %v798, 1.442695
    %v810 = vpow.pop %v809
    %v811 = vmul.f32 %v799, 1.442695
    %v812 = vpow.pop %v811
    %v813 = vmul.f32 %v800, 1.442695
    %v814 = vpow.pop %v813
    %v815 = vmul.f32 %v801, 1.442695
    %v816 = vpow.pop %v815
    %v817 = vmul.f32 %v802, 1.442695
    %v818 = vpow.pop %v817
    %v819 = vsel %vm386, %v804, 0.0
    %820 = vadd.xlane.f32.xlu0 %v819
    %v821 = vpop.xlane.xlu0 %820
    %v822 = vsel %vm386, %v806, 0.0
    %823 = vadd.xlane.f32.xlu0 %v822
    %v824 = vpop.xlane.xlu0 %823
    %v825 = vsel %vm386, %v808, 0.0
    %826 = vadd.xlane.f32.xlu0 %v825
    %v827 = vpop.xlane.xlu0 %826
    %v828 = vsel %vm386, %v810, 0.0
    %829 = vadd.xlane.f32.xlu0 %v828
    %v830 = vpop.xlane.xlu0 %829
    %v831 = vsel %vm386, %v812, 0.0
    %832 = vadd.xlane.f32.xlu0 %v831
    %v833 = vpop.xlane.xlu0 %832
    %v834 = vsel %vm386, %v814, 0.0
    %835 = vadd.xlane.f32.xlu0 %v834
    %v836 = vpop.xlane.xlu0 %835
    %v837 = vsel %vm386, %v816, 0.0
    %838 = vadd.xlane.f32.xlu0 %v837
    %v839 = vpop.xlane.xlu0 %838
    %v840 = vsel %vm386, %v818, 0.0
    %841 = vadd.xlane.f32.xlu0 %v840
    %v842 = vpop.xlane.xlu0 %841
    %v843 = vrcp.pop %v821
    %v844 = vrcp.pop %v824
    %v845 = vrcp.pop %v827
    %v846 = vrcp.pop %v830
    %v847 = vrcp.pop %v833
    %v848 = vrcp.pop %v836
    %v849 = vrcp.pop %v839
    %v850 = vrcp.pop %v842
    %v851 = vmul.f32 %v804, %v843
    %v852 = vmul.f32 %v806, %v844
    %v853 = vmul.f32 %v808, %v845
    %v854 = vmul.f32 %v810, %v846
    %v855 = vmul.f32 %v812, %v847
    %v856 = vmul.f32 %v814, %v848
    %v857 = vmul.f32 %v816, %v849
    %v858 = vmul.f32 %v818, %v850
    %v859 = vpack.c.bf16 %v851, %v851
    %v860 = vpack.c.bf16 %v852, %v852
    %v861 = vpack.c.bf16 %v853, %v853
    %v862 = vpack.c.bf16 %v854, %v854
    %v863 = vpack.c.bf16 %v855, %v855
    %v864 = vpack.c.bf16 %v856, %v856
    %v865 = vpack.c.bf16 %v857, %v857
    %v866 = vpack.c.bf16 %v858, %v858
    %v868 = vsel %vm386, %v859, 0
    %vm870 = vcmask 1043456
    %v872 = vsel %vm870, %v376, 0
    %874 = vmatprep.subr.bf16.mxu0 0
    %875 = vmatpush1.bf16.msra.mxu0 %v872
    %876 = vmatprep.subr.bf16.mxu0 0
    %877 = vmatpush1.bf16.msra.mxu0 0
    %878 = vmatprep.subr.bf16.mxu0 0
    %879 = vmatpush1.bf16.msra.mxu0 0
    %880 = vmatprep.subr.bf16.mxu0 0
    %881 = vmatpush1.bf16.msra.mxu0 0
    %882 = vmatprep.subr.bf16.mxu0 0
    %883 = vmatpush1.bf16.msra.mxu0 0
    %884 = vmatprep.subr.bf16.mxu0 0
    %885 = vmatpush1.bf16.msra.mxu0 0
    %886 = vmatprep.subr.bf16.mxu0 0
    %887 = vmatpush1.bf16.msra.mxu0 0
    %888 = vmatprep.subr.bf16.mxu0 0
    %889 = vmatpush1.bf16.msra.mxu0 0
    %890 = vmatprep.subr.bf16.mxu0 0
    %891 = vmatpush1.bf16.msra.mxu0 0
    %892 = vmatprep.subr.bf16.mxu0 0
    %893 = vmatpush1.bf16.msra.mxu0 0
    %894 = vmatprep.subr.bf16.mxu0 0
    %895 = vmatpush1.bf16.msra.mxu0 0
    %896 = vmatprep.subr.bf16.mxu0 0
    %897 = vmatpush1.bf16.msra.mxu0 0
    %898 = vmatprep.subr.bf16.mxu0 0
    %899 = vmatpush1.bf16.msra.mxu0 0
    %900 = vmatprep.subr.bf16.mxu0 0
    %901 = vmatpush1.bf16.msra.mxu0 0
    %902 = vmatprep.subr.bf16.mxu0 0
    %903 = vmatpush1.bf16.msra.mxu0 0
    %904 = vmatprep.subr.bf16.mxu0 0
    %905 = vmatpush1.bf16.msra.mxu0 0
    %906 = vmatprep.mubr.bf16.mxu0 0
    %907 = vmatmul.mubr.bf16.gmra.mrb[0].mxu0 %v868
    %v908 = vpop.f32.mrb[0].mxu0
    %v909 = vadd.f32 0.0, %v908
    %v910 = vpop.f32.mrb[0].mxu0
    %v911 = vpop.f32.mrb[0].mxu0
    %v912 = vpop.f32.mrb[0].mxu0
    %913 = vdwg.mxu0
    %v915 = vsel %vm386, %v860, 0
    %v918 = vsel %vm870, %v377, 0
    %920 = vmatprep.subr.bf16.mxu0 0
    %921 = vmatpush1.bf16.msra.mxu0 %v918
    %922 = vmatprep.subr.bf16.mxu0 0
    %923 = vmatpush1.bf16.msra.mxu0 0
    %924 = vmatprep.subr.bf16.mxu0 0
    %925 = vmatpush1.bf16.msra.mxu0 0
    %926 = vmatprep.subr.bf16.mxu0 0
    %927 = vmatpush1.bf16.msra.mxu0 0
    %928 = vmatprep.subr.bf16.mxu0 0
    %929 = vmatpush1.bf16.msra.mxu0 0
    %930 = vmatprep.subr.bf16.mxu0 0
    %931 = vmatpush1.bf16.msra.mxu0 0
    %932 = vmatprep.subr.bf16.mxu0 0
    %933 = vmatpush1.bf16.msra.mxu0 0
    %934 = vmatprep.subr.bf16.mxu0 0
    %935 = vmatpush1.bf16.msra.mxu0 0
    %936 = vmatprep.subr.bf16.mxu0 0
    %937 = vmatpush1.bf16.msra.mxu0 0
    %938 = vmatprep.subr.bf16.mxu0 0
    %939 = vmatpush1.bf16.msra.mxu0 0
    %940 = vmatprep.subr.bf16.mxu0 0
    %941 = vmatpush1.bf16.msra.mxu0 0
    %942 = vmatprep.subr.bf16.mxu0 0
    %943 = vmatpush1.bf16.msra.mxu0 0
    %944 = vmatprep.subr.bf16.mxu0 0
    %945 = vmatpush1.bf16.msra.mxu0 0
    %946 = vmatprep.subr.bf16.mxu0 0
    %947 = vmatpush1.bf16.msra.mxu0 0
    %948 = vmatprep.subr.bf16.mxu0 0
    %949 = vmatpush1.bf16.msra.mxu0 0
    %950 = vmatprep.subr.bf16.mxu0 0
    %951 = vmatpush1.bf16.msra.mxu0 0
    %952 = vmatprep.mubr.bf16.mxu0 0
    %953 = vmatmul.mubr.bf16.gmra.mrb[0].mxu0 %v915
    %v954 = vpop.f32.mrb[0].mxu0
    %v955 = vadd.f32 0.0, %v954
    %v956 = vpop.f32.mrb[0].mxu0
    %v957 = vpop.f32.mrb[0].mxu0
    %v958 = vpop.f32.mrb[0].mxu0
    %959 = vdwg.mxu0
    %v961 = vsel %vm386, %v861, 0
    %v964 = vsel %vm870, %v378, 0
    %966 = vmatprep.subr.bf16.mxu0 0
    %967 = vmatpush1.bf16.msra.mxu0 %v964
    %968 = vmatprep.subr.bf16.mxu0 0
    %969 = vmatpush1.bf16.msra.mxu0 0
    %970 = vmatprep.subr.bf16.mxu0 0
    %971 = vmatpush1.bf16.msra.mxu0 0
    %972 = vmatprep.subr.bf16.mxu0 0
    %973 = vmatpush1.bf16.msra.mxu0 0
    %974 = vmatprep.subr.bf16.mxu0 0
    %975 = vmatpush1.bf16.msra.mxu0 0
    %976 = vmatprep.subr.bf16.mxu0 0
    %977 = vmatpush1.bf16.msra.mxu0 0
    %978 = vmatprep.subr.bf16.mxu0 0
    %979 = vmatpush1.bf16.msra.mxu0 0
    %980 = vmatprep.subr.bf16.mxu0 0
    %981 = vmatpush1.bf16.msra.mxu0 0
    %982 = vmatprep.subr.bf16.mxu0 0
    %983 = vmatpush1.bf16.msra.mxu0 0
    %984 = vmatprep.subr.bf16.mxu0 0
    %985 = vmatpush1.bf16.msra.mxu0 0
    %986 = vmatprep.subr.bf16.mxu0 0
    %987 = vmatpush1.bf16.msra.mxu0 0
    %988 = vmatprep.subr.bf16.mxu0 0
    %989 = vmatpush1.bf16.msra.mxu0 0
    %990 = vmatprep.subr.bf16.mxu0 0
    %991 = vmatpush1.bf16.msra.mxu0 0
    %992 = vmatprep.subr.bf16.mxu0 0
    %993 = vmatpush1.bf16.msra.mxu0 0
    %994 = vmatprep.subr.bf16.mxu0 0
    %995 = vmatpush1.bf16.msra.mxu0 0
    %996 = vmatprep.subr.bf16.mxu0 0
    %997 = vmatpush1.bf16.msra.mxu0 0
    %998 = vmatprep.mubr.bf16.mxu0 0
    %999 = vmatmul.mubr.bf16.gmra.mrb[0].mxu0 %v961
    %v1000 = vpop.f32.mrb[0].mxu0
    %v1001 = vadd.f32 0.0, %v1000
    %v1002 = vpop.f32.mrb[0].mxu0
    %v1003 = vpop.f32.mrb[0].mxu0
    %v1004 = vpop.f32.mrb[0].mxu0
    %1005 = vdwg.mxu0
    %v1007 = vsel %vm386, %v862, 0
    %v1010 = vsel %vm870, %v379, 0
    %1012 = vmatprep.subr.bf16.mxu0 0
    %1013 = vmatpush1.bf16.msra.mxu0 %v1010
    %1014 = vmatprep.subr.bf16.mxu0 0
    %1015 = vmatpush1.bf16.msra.mxu0 0
    %1016 = vmatprep.subr.bf16.mxu0 0
    %1017 = vmatpush1.bf16.msra.mxu0 0
    %1018 = vmatprep.subr.bf16.mxu0 0
    %1019 = vmatpush1.bf16.msra.mxu0 0
    %1020 = vmatprep.subr.bf16.mxu0 0
    %1021 = vmatpush1.bf16.msra.mxu0 0
    %1022 = vmatprep.subr.bf16.mxu0 0
    %1023 = vmatpush1.bf16.msra.mxu0 0
    %1024 = vmatprep.subr.bf16.mxu0 0
    %1025 = vmatpush1.bf16.msra.mxu0 0
    %1026 = vmatprep.subr.bf16.mxu0 0
    %1027 = vmatpush1.bf16.msra.mxu0 0
    %1028 = vmatprep.subr.bf16.mxu0 0
    %1029 = vmatpush1.bf16.msra.mxu0 0
    %1030 = vmatprep.subr.bf16.mxu0 0
    %1031 = vmatpush1.bf16.msra.mxu0 0
    %1032 = vmatprep.subr.bf16.mxu0 0
    %1033 = vmatpush1.bf16.msra.mxu0 0
    %1034 = vmatprep.subr.bf16.mxu0 0
    %1035 = vmatpush1.bf16.msra.mxu0 0
    %1036 = vmatprep.subr.bf16.mxu0 0
    %1037 = vmatpush1.bf16.msra.mxu0 0
    %1038 = vmatprep.subr.bf16.mxu0 0
    %1039 = vmatpush1.bf16.msra.mxu0 0
    %1040 = vmatprep.subr.bf16.mxu0 0
    %1041 = vmatpush1.bf16.msra.mxu0 0
    %1042 = vmatprep.subr.bf16.mxu0 0
    %1043 = vmatpush1.bf16.msra.mxu0 0
    %1044 = vmatprep.mubr.bf16.mxu0 0
    %1045 = vmatmul.mubr.bf16.gmra.mrb[0].mxu0 %v1007
    %v1046 = vpop.f32.mrb[0].mxu0
    %v1047 = vadd.f32 0.0, %v1046
    %v1048 = vpop.f32.mrb[0].mxu0
    %v1049 = vpop.f32.mrb[0].mxu0
    %v1050 = vpop.f32.mrb[0].mxu0
    %1051 = vdwg.mxu0
    %v1053 = vsel %vm386, %v863, 0
    %v1056 = vsel %vm870, %v380, 0
    %1058 = vmatprep.subr.bf16.mxu0 0
    %1059 = vmatpush1.bf16.msra.mxu0 %v1056
    %1060 = vmatprep.subr.bf16.mxu0 0
    %1061 = vmatpush1.bf16.msra.mxu0 0
    %1062 = vmatprep.subr.bf16.mxu0 0
    %1063 = vmatpush1.bf16.msra.mxu0 0
    %1064 = vmatprep.subr.bf16.mxu0 0
    %1065 = vmatpush1.bf16.msra.mxu0 0
    %1066 = vmatprep.subr.bf16.mxu0 0
    %1067 = vmatpush1.bf16.msra.mxu0 0
    %1068 = vmatprep.subr.bf16.mxu0 0
    %1069 = vmatpush1.bf16.msra.mxu0 0
    %1070 = vmatprep.subr.bf16.mxu0 0
    %1071 = vmatpush1.bf16.msra.mxu0 0
    %1072 = vmatprep.subr.bf16.mxu0 0
    %1073 = vmatpush1.bf16.msra.mxu0 0
    %1074 = vmatprep.subr.bf16.mxu0 0
    %1075 = vmatpush1.bf16.msra.mxu0 0
    %1076 = vmatprep.subr.bf16.mxu0 0
    %1077 = vmatpush1.bf16.msra.mxu0 0
    %1078 = vmatprep.subr.bf16.mxu0 0
    %1079 = vmatpush1.bf16.msra.mxu0 0
    %1080 = vmatprep.subr.bf16.mxu0 0
    %1081 = vmatpush1.bf16.msra.mxu0 0
    %1082 = vmatprep.subr.bf16.mxu0 0
    %1083 = vmatpush1.bf16.msra.mxu0 0
    %1084 = vmatprep.subr.bf16.mxu0 0
    %1085 = vmatpush1.bf16.msra.mxu0 0
    %1086 = vmatprep.subr.bf16.mxu0 0
    %1087 = vmatpush1.bf16.msra.mxu0 0
    %1088 = vmatprep.subr.bf16.mxu0 0
    %1089 = vmatpush1.bf16.msra.mxu0 0
    %1090 = vmatprep.mubr.bf16.mxu0 0
    %1091 = vmatmul.mubr.bf16.gmra.mrb[0].mxu0 %v1053
    %v1092 = vpop.f32.mrb[0].mxu0
    %v1093 = vadd.f32 0.0, %v1092
    %v1094 = vpop.f32.mrb[0].mxu0
    %v1095 = vpop.f32.mrb[0].mxu0
    %v1096 = vpop.f32.mrb[0].mxu0
    %1097 = vdwg.mxu0
    %v1099 = vsel %vm386, %v864, 0
    %v1102 = vsel %vm870, %v381, 0
    %1104 = vmatprep.subr.bf16.mxu0 0
    %1105 = vmatpush1.bf16.msra.mxu0 %v1102
    %1106 = vmatprep.subr.bf16.mxu0 0
    %1107 = vmatpush1.bf16.msra.mxu0 0
    %1108 = vmatprep.subr.bf16.mxu0 0
    %1109 = vmatpush1.bf16.msra.mxu0 0
    %1110 = vmatprep.subr.bf16.mxu0 0
    %1111 = vmatpush1.bf16.msra.mxu0 0
    %1112 = vmatprep.subr.bf16.mxu0 0
    %1113 = vmatpush1.bf16.msra.mxu0 0
    %1114 = vmatprep.subr.bf16.mxu0 0
    %1115 = vmatpush1.bf16.msra.mxu0 0
    %1116 = vmatprep.subr.bf16.mxu0 0
    %1117 = vmatpush1.bf16.msra.mxu0 0
    %1118 = vmatprep.subr.bf16.mxu0 0
    %1119 = vmatpush1.bf16.msra.mxu0 0
    %1120 = vmatprep.subr.bf16.mxu0 0
    %1121 = vmatpush1.bf16.msra.mxu0 0
    %1122 = vmatprep.subr.bf16.mxu0 0
    %1123 = vmatpush1.bf16.msra.mxu0 0
    %1124 = vmatprep.subr.bf16.mxu0 0
    %1125 = vmatpush1.bf16.msra.mxu0 0
    %1126 = vmatprep.subr.bf16.mxu0 0
    %1127 = vmatpush1.bf16.msra.mxu0 0
    %1128 = vmatprep.subr.bf16.mxu0 0
    %1129 = vmatpush1.bf16.msra.mxu0 0
    %1130 = vmatprep.subr.bf16.mxu0 0
    %1131 = vmatpush1.bf16.msra.mxu0 0
    %1132 = vmatprep.subr.bf16.mxu0 0
    %1133 = vmatpush1.bf16.msra.mxu0 0
    %1134 = vmatprep.subr.bf16.mxu0 0
    %1135 = vmatpush1.bf16.msra.mxu0 0
    %1136 = vmatprep.mubr.bf16.mxu0 0
    %1137 = vmatmul.mubr.bf16.gmra.mrb[0].mxu0 %v1099
    %v1138 = vpop.f32.mrb[0].mxu0
    %v1139 = vadd.f32 0.0, %v1138
    %v1140 = vpop.f32.mrb[0].mxu0
    %v1141 = vpop.f32.mrb[0].mxu0
    %v1142 = vpop.f32.mrb[0].mxu0
    %1143 = vdwg.mxu0
    %v1145 = vsel %vm386, %v865, 0
    %v1148 = vsel %vm870, %v382, 0
    %1150 = vmatprep.subr.bf16.mxu0 0
    %1151 = vmatpush1.bf16.msra.mxu0 %v1148
    %1152 = vmatprep.subr.bf16.mxu0 0
    %1153 = vmatpush1.bf16.msra.mxu0 0
    %1154 = vmatprep.subr.bf16.mxu0 0
    %1155 = vmatpush1.bf16.msra.mxu0 0
    %1156 = vmatprep.subr.bf16.mxu0 0
    %1157 = vmatpush1.bf16.msra.mxu0 0
    %1158 = vmatprep.subr.bf16.mxu0 0
    %1159 = vmatpush1.bf16.msra.mxu0 0
    %1160 = vmatprep.subr.bf16.mxu0 0
    %1161 = vmatpush1.bf16.msra.mxu0 0
    %1162 = vmatprep.subr.bf16.mxu0 0
    %1163 = vmatpush1.bf16.msra.mxu0 0
    %1164 = vmatprep.subr.bf16.mxu0 0
    %1165 = vmatpush1.bf16.msra.mxu0 0
    %1166 = vmatprep.subr.bf16.mxu0 0
    %1167 = vmatpush1.bf16.msra.mxu0 0
    %1168 = vmatprep.subr.bf16.mxu0 0
    %1169 = vmatpush1.bf16.msra.mxu0 0
    %1170 = vmatprep.subr.bf16.mxu0 0
    %1171 = vmatpush1.bf16.msra.mxu0 0
    %1172 = vmatprep.subr.bf16.mxu0 0
    %1173 = vmatpush1.bf16.msra.mxu0 0
    %1174 = vmatprep.subr.bf16.mxu0 0
    %1175 = vmatpush1.bf16.msra.mxu0 0
    %1176 = vmatprep.subr.bf16.mxu0 0
    %1177 = vmatpush1.bf16.msra.mxu0 0
    %1178 = vmatprep.subr.bf16.mxu0 0
    %1179 = vmatpush1.bf16.msra.mxu0 0
    %1180 = vmatprep.subr.bf16.mxu0 0
    %1181 = vmatpush1.bf16.msra.mxu0 0
    %1182 = vmatprep.mubr.bf16.mxu0 0
    %1183 = vmatmul.mubr.bf16.gmra.mrb[0].mxu0 %v1145
    %v1184 = vpop.f32.mrb[0].mxu0
    %v1185 = vadd.f32 0.0, %v1184
    %v1186 = vpop.f32.mrb[0].mxu0
    %v1187 = vpop.f32.mrb[0].mxu0
    %v1188 = vpop.f32.mrb[0].mxu0
    %1189 = vdwg.mxu0
    %v1191 = vsel %vm386, %v866, 0
    %v1194 = vsel %vm870, %v383, 0
    %1196 = vmatprep.subr.bf16.mxu0 0
    %1197 = vmatpush1.bf16.msra.mxu0 %v1194
    %1198 = vmatprep.subr.bf16.mxu0 0
    %1199 = vmatpush1.bf16.msra.mxu0 0
    %1200 = vmatprep.subr.bf16.mxu0 0
    %1201 = vmatpush1.bf16.msra.mxu0 0
    %1202 = vmatprep.subr.bf16.mxu0 0
    %1203 = vmatpush1.bf16.msra.mxu0 0
    %1204 = vmatprep.subr.bf16.mxu0 0
    %1205 = vmatpush1.bf16.msra.mxu0 0
    %1206 = vmatprep.subr.bf16.mxu0 0
    %1207 = vmatpush1.bf16.msra.mxu0 0
    %1208 = vmatprep.subr.bf16.mxu0 0
    %1209 = vmatpush1.bf16.msra.mxu0 0
    %1210 = vmatprep.subr.bf16.mxu0 0
    %1211 = vmatpush1.bf16.msra.mxu0 0
    %1212 = vmatprep.subr.bf16.mxu0 0
    %1213 = vmatpush1.bf16.msra.mxu0 0
    %1214 = vmatprep.subr.bf16.mxu0 0
    %1215 = vmatpush1.bf16.msra.mxu0 0
    %1216 = vmatprep.subr.bf16.mxu0 0
    %1217 = vmatpush1.bf16.msra.mxu0 0
    %1218 = vmatprep.subr.bf16.mxu0 0
    %1219 = vmatpush1.bf16.msra.mxu0 0
    %1220 = vmatprep.subr.bf16.mxu0 0
    %1221 = vmatpush1.bf16.msra.mxu0 0
    %1222 = vmatprep.subr.bf16.mxu0 0
    %1223 = vmatpush1.bf16.msra.mxu0 0
    %1224 = vmatprep.subr.bf16.mxu0 0
    %1225 = vmatpush1.bf16.msra.mxu0 0
    %1226 = vmatprep.subr.bf16.mxu0 0
    %1227 = vmatpush1.bf16.msra.mxu0 0
    %1228 = vmatprep.mubr.bf16.mxu0 0
    %1229 = vmatmul.mubr.bf16.gmra.mrb[0].mxu0 %v1191
    %v1230 = vpop.f32.mrb[0].mxu0
    %v1231 = vadd.f32 0.0, %v1230
    %v1232 = vpop.f32.mrb[0].mxu0
    %v1233 = vpop.f32.mrb[0].mxu0
    %v1234 = vpop.f32.mrb[0].mxu0
    %1235 = vdwg.mxu0
    %v1236 = vpack.c.bf16 %v955, %v909
    %v1237 = vpack.c.bf16 %v1047, %v1001
    %v1238 = vpack.c.bf16 %v1139, %v1093
    %v1239 = vpack.c.bf16 %v1231, %v1185
    %v1240 = vld [vmem:[#allocation2] sm:$0xf]
    %v1241 = vld [vmem:[#allocation2 + $0x4] sm:$0xf]
    %v1242 = vld [vmem:[#allocation2 + $0x8] sm:$0xf]
    %v1243 = vld [vmem:[#allocation2 + $0xc] sm:$0xf]
    %v1245 = vsel %vm386, %v1236, 0
    %v1248 = vsel %vm870, %v1240, 0
    %1250 = vmatprep.subr.bf16.mxu0 0
    %1251 = vmatpush1.bf16.msra.mxu0 %v1248
    %1252 = vmatprep.subr.bf16.mxu0 0
    %1253 = vmatpush1.bf16.msra.mxu0 0
    %1254 = vmatprep.subr.bf16.mxu0 0
    %1255 = vmatpush1.bf16.msra.mxu0 0
    %1256 = vmatprep.subr.bf16.mxu0 0
    %1257 = vmatpush1.bf16.msra.mxu0 0
    %1258 = vmatprep.subr.bf16.mxu0 0
    %1259 = vmatpush1.bf16.msra.mxu0 0
    %1260 = vmatprep.subr.bf16.mxu0 0
    %1261 = vmatpush1.bf16.msra.mxu0 0
    %1262 = vmatprep.subr.bf16.mxu0 0
    %1263 = vmatpush1.bf16.msra.mxu0 0
    %1264 = vmatprep.subr.bf16.mxu0 0
    %1265 = vmatpush1.bf16.msra.mxu0 0
    %1266 = vmatprep.subr.bf16.mxu0 0
    %1267 = vmatpush1.bf16.msra.mxu0 0
    %1268 = vmatprep.subr.bf16.mxu0 0
    %1269 = vmatpush1.bf16.msra.mxu0 0
    %1270 = vmatprep.subr.bf16.mxu0 0
    %1271 = vmatpush1.bf16.msra.mxu0 0
    %1272 = vmatprep.subr.bf16.mxu0 0
    %1273 = vmatpush1.bf16.msra.mxu0 0
    %1274 = vmatprep.subr.bf16.mxu0 0
    %1275 = vmatpush1.bf16.msra.mxu0 0
    %1276 = vmatprep.subr.bf16.mxu0 0
    %1277 = vmatpush1.bf16.msra.mxu0 0
    %1278 = vmatprep.subr.bf16.mxu0 0
    %1279 = vmatpush1.bf16.msra.mxu0 0
    %1280 = vmatprep.subr.bf16.mxu0 0
    %1281 = vmatpush1.bf16.msra.mxu0 0
    %1282 = vmatprep.mubr.bf16.mxu0 0
    %1283 = vmatmul.mubr.bf16.gmra.mrb[0].mxu0 %v1245
    %v1284 = vpop.f32.mrb[0].mxu0
    %v1285 = vadd.f32 0.0, %v1284
    %v1286 = vpop.f32.mrb[0].mxu0
    %v1287 = vpop.f32.mrb[0].mxu0
    %v1288 = vadd.f32 0.0, %v1287
    %v1289 = vpop.f32.mrb[0].mxu0
    %1290 = vdwg.mxu0
    %v1292 = vsel %vm386, %v1237, 0
    %v1295 = vsel %vm870, %v1241, 0
    %1297 = vmatprep.subr.bf16.mxu0 0
    %1298 = vmatpush1.bf16.msra.mxu0 %v1295
    %1299 = vmatprep.subr.bf16.mxu0 0
    %1300 = vmatpush1.bf16.msra.mxu0 0
    %1301 = vmatprep.subr.bf16.mxu0 0
    %1302 = vmatpush1.bf16.msra.mxu0 0
    %1303 = vmatprep.subr.bf16.mxu0 0
    %1304 = vmatpush1.bf16.msra.mxu0 0
    %1305 = vmatprep.subr.bf16.mxu0 0
    %1306 = vmatpush1.bf16.msra.mxu0 0
    %1307 = vmatprep.subr.bf16.mxu0 0
    %1308 = vmatpush1.bf16.msra.mxu0 0
    %1309 = vmatprep.subr.bf16.mxu0 0
    %1310 = vmatpush1.bf16.msra.mxu0 0
    %1311 = vmatprep.subr.bf16.mxu0 0
    %1312 = vmatpush1.bf16.msra.mxu0 0
    %1313 = vmatprep.subr.bf16.mxu0 0
    %1314 = vmatpush1.bf16.msra.mxu0 0
    %1315 = vmatprep.subr.bf16.mxu0 0
    %1316 = vmatpush1.bf16.msra.mxu0 0
    %1317 = vmatprep.subr.bf16.mxu0 0
    %1318 = vmatpush1.bf16.msra.mxu0 0
    %1319 = vmatprep.subr.bf16.mxu0 0
    %1320 = vmatpush1.bf16.msra.mxu0 0
    %1321 = vmatprep.subr.bf16.mxu0 0
    %1322 = vmatpush1.bf16.msra.mxu0 0
    %1323 = vmatprep.subr.bf16.mxu0 0
    %1324 = vmatpush1.bf16.msra.mxu0 0
    %1325 = vmatprep.subr.bf16.mxu0 0
    %1326 = vmatpush1.bf16.msra.mxu0 0
    %1327 = vmatprep.subr.bf16.mxu0 0
    %1328 = vmatpush1.bf16.msra.mxu0 0
    %1329 = vmatprep.mubr.bf16.mxu0 0
    %1330 = vmatmul.mubr.bf16.gmra.mrb[0].mxu0 %v1292
    %v1331 = vpop.f32.mrb[0].mxu0
    %v1332 = vadd.f32 0.0, %v1331
    %v1333 = vpop.f32.mrb[0].mxu0
    %v1334 = vpop.f32.mrb[0].mxu0
    %v1335 = vadd.f32 0.0, %v1334
    %v1336 = vpop.f32.mrb[0].mxu0
    %1337 = vdwg.mxu0
    %v1339 = vsel %vm386, %v1238, 0
    %v1342 = vsel %vm870, %v1242, 0
    %1344 = vmatprep.subr.bf16.mxu0 0
    %1345 = vmatpush1.bf16.msra.mxu0 %v1342
    %1346 = vmatprep.subr.bf16.mxu0 0
    %1347 = vmatpush1.bf16.msra.mxu0 0
    %1348 = vmatprep.subr.bf16.mxu0 0
    %1349 = vmatpush1.bf16.msra.mxu0 0
    %1350 = vmatprep.subr.bf16.mxu0 0
    %1351 = vmatpush1.bf16.msra.mxu0 0
    %1352 = vmatprep.subr.bf16.mxu0 0
    %1353 = vmatpush1.bf16.msra.mxu0 0
    %1354 = vmatprep.subr.bf16.mxu0 0
    %1355 = vmatpush1.bf16.msra.mxu0 0
    %1356 = vmatprep.subr.bf16.mxu0 0
    %1357 = vmatpush1.bf16.msra.mxu0 0
    %1358 = vmatprep.subr.bf16.mxu0 0
    %1359 = vmatpush1.bf16.msra.mxu0 0
    %1360 = vmatprep.subr.bf16.mxu0 0
    %1361 = vmatpush1.bf16.msra.mxu0 0
    %1362 = vmatprep.subr.bf16.mxu0 0
    %1363 = vmatpush1.bf16.msra.mxu0 0
    %1364 = vmatprep.subr.bf16.mxu0 0
    %1365 = vmatpush1.bf16.msra.mxu0 0
    %1366 = vmatprep.subr.bf16.mxu0 0
    %1367 = vmatpush1.bf16.msra.mxu0 0
    %1368 = vmatprep.subr.bf16.mxu0 0
    %1369 = vmatpush1.bf16.msra.mxu0 0
    %1370 = vmatprep.subr.bf16.mxu0 0
    %1371 = vmatpush1.bf16.msra.mxu0 0
    %1372 = vmatprep.subr.bf16.mxu0 0
    %1373 = vmatpush1.bf16.msra.mxu0 0
    %1374 = vmatprep.subr.bf16.mxu0 0
    %1375 = vmatpush1.bf16.msra.mxu0 0
    %1376 = vmatprep.mubr.bf16.mxu0 0
    %1377 = vmatmul.mubr.bf16.gmra.mrb[0].mxu0 %v1339
    %v1378 = vpop.f32.mrb[0].mxu0
    %v1379 = vadd.f32 0.0, %v1378
    %v1380 = vpop.f32.mrb[0].mxu0
    %v1381 = vpop.f32.mrb[0].mxu0
    %v1382 = vadd.f32 0.0, %v1381
    %v1383 = vpop.f32.mrb[0].mxu0
    %1384 = vdwg.mxu0
    %v1386 = vsel %vm386, %v1239, 0
    %v1389 = vsel %vm870, %v1243, 0
    %1391 = vmatprep.subr.bf16.mxu0 0
    %1392 = vmatpush1.bf16.msra.mxu0 %v1389
    %1393 = vmatprep.subr.bf16.mxu0 0
    %1394 = vmatpush1.bf16.msra.mxu0 0
    %1395 = vmatprep.subr.bf16.mxu0 0
    %1396 = vmatpush1.bf16.msra.mxu0 0
    %1397 = vmatprep.subr.bf16.mxu0 0
    %1398 = vmatpush1.bf16.msra.mxu0 0
    %1399 = vmatprep.subr.bf16.mxu0 0
    %1400 = vmatpush1.bf16.msra.mxu0 0
    %1401 = vmatprep.subr.bf16.mxu0 0
    %1402 = vmatpush1.bf16.msra.mxu0 0
    %1403 = vmatprep.subr.bf16.mxu0 0
    %1404 = vmatpush1.bf16.msra.mxu0 0
    %1405 = vmatprep.subr.bf16.mxu0 0
    %1406 = vmatpush1.bf16.msra.mxu0 0
    %1407 = vmatprep.subr.bf16.mxu0 0
    %1408 = vmatpush1.bf16.msra.mxu0 0
    %1409 = vmatprep.subr.bf16.mxu0 0
    %1410 = vmatpush1.bf16.msra.mxu0 0
    %1411 = vmatprep.subr.bf16.mxu0 0
    %1412 = vmatpush1.bf16.msra.mxu0 0
    %1413 = vmatprep.subr.bf16.mxu0 0
    %1414 = vmatpush1.bf16.msra.mxu0 0
    %1415 = vmatprep.subr.bf16.mxu0 0
    %1416 = vmatpush1.bf16.msra.mxu0 0
    %1417 = vmatprep.subr.bf16.mxu0 0
    %1418 = vmatpush1.bf16.msra.mxu0 0
    %1419 = vmatprep.subr.bf16.mxu0 0
    %1420 = vmatpush1.bf16.msra.mxu0 0
    %1421 = vmatprep.subr.bf16.mxu0 0
    %1422 = vmatpush1.bf16.msra.mxu0 0
    %1423 = vmatprep.mubr.bf16.mxu0 0
    %1424 = vmatmul.mubr.bf16.gmra.mrb[0].mxu0 %v1386
    %v1425 = vpop.f32.mrb[0].mxu0
    %v1426 = vadd.f32 0.0, %v1425
    %v1427 = vpop.f32.mrb[0].mxu0
    %v1428 = vpop.f32.mrb[0].mxu0
    %v1429 = vadd.f32 0.0, %v1428
    %v1430 = vpop.f32.mrb[0].mxu0
    %1431 = vdwg.mxu0
    %v1432 = vsel %vm81, %v1285, 0.0
    %v1433 = vsel %vm81, %v1332, 0.0
    %v1434 = vadd.f32 %v1432, %v1433
    %v1435 = vsel %vm81, %v1379, 0.0
    %v1436 = vadd.f32 %v1434, %v1435
    %v1437 = vsel %vm81, %v1426, 0.0
    %v1438 = vadd.f32 %v1436, %v1437
    %v1439 = vsel %vm81, %v1288, 0.0
    %v1440 = vsel %vm81, %v1335, 0.0
    %v1441 = vadd.f32 %v1439, %v1440
    %v1442 = vsel %vm81, %v1382, 0.0
    %v1443 = vadd.f32 %v1441, %v1442
    %v1444 = vsel %vm81, %v1429, 0.0
    %v1445 = vadd.f32 %v1443, %v1444
    %v1446 = vadd.f32 %v77, %v1438
    %v1447 = vadd.f32 %v78, %v1445
    %v1448 = vld [vmem:[%s12] sm:$0x1]
    %v1449 = vld [vmem:[%s13] sm:$0x1]
    %v1450 = vsel %vm81, %v1446, 0.0
    %1451 = vadd.xlane.f32.xlu0 %v1450
    %v1452 = vpop.xlane.xlu0 %1451
    %v1453 = vsel %vm81, %v1447, 0.0
    %1454 = vadd.xlane.f32.xlu0 %v1453
    %v1455 = vpop.xlane.xlu0 %1454
    %v1456 = vmul.f32 %v1452, %v88
    %v1457 = vmul.f32 %v1455, %v88
    %v1458 = vsub.f32 %v1446, %v1456
    %v1459 = vsub.f32 %v1447, %v1457
    %v1460 = vmul.f32 %v1458, %v1458
    %v1461 = vmul.f32 %v1459, %v1459
    %v1462 = vsel %vm81, %v1460, 0.0
    %1463 = vadd.xlane.f32.xlu0 %v1462
    %v1464 = vpop.xlane.xlu0 %1463
    %v1465 = vsel %vm81, %v1461, 0.0
    %1466 = vadd.xlane.f32.xlu0 %v1465
    %v1467 = vpop.xlane.xlu0 %1466
    %v1468 = vmul.f32 %v1464, %v88
    %v1469 = vmul.f32 %v1467, %v88
    %v1470 = vadd.f32 %v1468, 1e-05
    %v1471 = vadd.f32 %v1469, 1e-05
    %v1472 = vrsqrt.pop %v1470
    %v1473 = vrsqrt.pop %v1471
    %v1474 = vmul.f32 %v1458, %v1472
    %v1475 = vmul.f32 %v1459, %v1473
    %v1477 = vlaneseq
    %v1478 = vshrl.u32 %v1477, 7
    %v1479 = vsub.s32 0, %v1478
    %v1480 = vrot.slane %v1448, %v1479
    %v1482 = vmul.f32 %v1474, %v1480
    %v1483 = vmul.f32 %v1475, %v1480
    %v1485 = vlaneseq
    %v1486 = vshrl.u32 %v1485, 7
    %v1487 = vsub.s32 0, %v1486
    %v1488 = vrot.slane %v1449, %v1487
    %v1490 = vadd.f32 %v1482, %v1488
    %v1491 = vadd.f32 %v1483, %v1488
    %v1492 = vpack.c.bf16 %v1491, %v1490
    %v1493 = vld [vmem:[#allocation5] sm:$0xf]
    %v1494 = vld [vmem:[#allocation5 + $0x4] sm:$0xf]
    %v1495 = vld [vmem:[#allocation5 + $0x8] sm:$0xf]
    %v1496 = vld [vmem:[#allocation5 + $0xc] sm:$0xf]
    %v1497 = vld [vmem:[%s9] sm:$0x1]
    %v1499 = vlaneseq
    %v1500 = vshrl.u32 %v1499, 7
    %v1501 = vsub.s32 0, %v1500
    %v1502 = vrot.slane %v1497, %v1501
    %v1508 = vunpack.c.l.b16 %v1493
    %v1509 = vunpack.c.l.b16 %v1494
    %v1510 = vunpack.c.l.b16 %v1495
    %v1511 = vunpack.c.l.b16 %v1496
    %v1512 = vpack.c.b16 %v1509, %v1508
    %v1513 = vpack.c.b16 %v1511, %v1510
    %v1517 = vsel %vm81, %v1492, 0
    %1519 = vmatprep.subr.bf16.mxu0 0
    %1520 = vmatpush1.bf16.msra.mxu0 %v1512
    %1521 = vmatprep.subr.bf16.mxu0 0
    %1522 = vmatpush1.bf16.msra.mxu0 %v1513
    %1523 = vmatprep.subr.bf16.mxu0 0
    %1524 = vmatpush1.bf16.msra.mxu0 0
    %1525 = vmatprep.subr.bf16.mxu0 0
    %1526 = vmatpush1.bf16.msra.mxu0 0
    %1527 = vmatprep.subr.bf16.mxu0 0
    %1528 = vmatpush1.bf16.msra.mxu0 0
    %1529 = vmatprep.subr.bf16.mxu0 0
    %1530 = vmatpush1.bf16.msra.mxu0 0
    %1531 = vmatprep.subr.bf16.mxu0 0
    %1532 = vmatpush1.bf16.msra.mxu0 0
    %1533 = vmatprep.subr.bf16.mxu0 0
    %1534 = vmatpush1.bf16.msra.mxu0 0
    %1535 = vmatprep.subr.bf16.mxu0 0
    %1536 = vmatpush1.bf16.msra.mxu0 0
    %1537 = vmatprep.subr.bf16.mxu0 0
    %1538 = vmatpush1.bf16.msra.mxu0 0
    %1539 = vmatprep.subr.bf16.mxu0 0
    %1540 = vmatpush1.bf16.msra.mxu0 0
    %1541 = vmatprep.subr.bf16.mxu0 0
    %1542 = vmatpush1.bf16.msra.mxu0 0
    %1543 = vmatprep.subr.bf16.mxu0 0
    %1544 = vmatpush1.bf16.msra.mxu0 0
    %1545 = vmatprep.subr.bf16.mxu0 0
    %1546 = vmatpush1.bf16.msra.mxu0 0
    %1547 = vmatprep.subr.bf16.mxu0 0
    %1548 = vmatpush1.bf16.msra.mxu0 0
    %1549 = vmatprep.subr.bf16.mxu0 0
    %1550 = vmatpush1.bf16.msra.mxu0 0
    %1551 = vmatprep.mubr.bf16.mxu0 0
    %1552 = vmatmul.mubr.bf16.gmra.mrb[0].mxu0 %v1517
    %v1553 = vpop.f32.mrb[0].mxu0
    %v1554 = vadd.f32 %v1502, %v1553
    %v1555 = vpop.f32.mrb[0].mxu0
    %v1556 = vpop.f32.mrb[0].mxu0
    %v1557 = vadd.f32 %v1502, %v1556
    %v1558 = vpop.f32.mrb[0].mxu0
    %1559 = vdwg.mxu0
    %v1560 = vmax.f32 %v1554, 0.0
    %v1561 = vmax.f32 %v1557, 0.0
    %v1562 = vpack.c.bf16 %v1561, %v1560
    %v1563 = vld [vmem:[%s10] sm:$0xf]
    %v1564 = vld [vmem:[%s10 + $0x4] sm:$0xf]
    %v1565 = vld [vmem:[%s10 + $0x8] sm:$0xf]
    %v1566 = vld [vmem:[%s10 + $0xc] sm:$0xf]
    %v1567 = vld [vmem:[%s10 + $0x10] sm:$0xf]
    %v1568 = vld [vmem:[%s10 + $0x14] sm:$0xf]
    %v1569 = vld [vmem:[%s10 + $0x18] sm:$0xf]
    %v1570 = vld [vmem:[%s10 + $0x1c] sm:$0xf]
    %v1571 = vld [vmem:[%s10 + $0x20] sm:$0xf]
    %v1572 = vld [vmem:[%s10 + $0x24] sm:$0xf]
    %v1573 = vld [vmem:[%s10 + $0x28] sm:$0xf]
    %v1574 = vld [vmem:[%s10 + $0x2c] sm:$0xf]
    %v1575 = vld [vmem:[%s10 + $0x30] sm:$0xf]
    %v1576 = vld [vmem:[%s10 + $0x34] sm:$0xf]
    %v1577 = vld [vmem:[%s10 + $0x38] sm:$0xf]
    %v1578 = vld [vmem:[%s10 + $0x3c] sm:$0xf]
    %v1579 = vld [vmem:[%s11] sm:$0x1]
    %v1581 = vlaneseq
    %v1582 = vshrl.u32 %v1581, 7
    %v1583 = vsub.s32 0, %v1582
    %v1584 = vrot.slane %v1579, %v1583
    %v1602 = vunpack.c.l.b16 %v1563
    %v1603 = vunpack.c.l.b16 %v1564
    %v1604 = vunpack.c.l.b16 %v1565
    %v1605 = vunpack.c.l.b16 %v1566
    %v1606 = vunpack.c.l.b16 %v1567
    %v1607 = vunpack.c.l.b16 %v1568
    %v1608 = vunpack.c.l.b16 %v1569
    %v1609 = vunpack.c.l.b16 %v1570
    %v1610 = vunpack.c.l.b16 %v1571
    %v1611 = vunpack.c.l.b16 %v1572
    %v1612 = vunpack.c.l.b16 %v1573
    %v1613 = vunpack.c.l.b16 %v1574
    %v1614 = vunpack.c.l.b16 %v1575
    %v1615 = vunpack.c.l.b16 %v1576
    %v1616 = vunpack.c.l.b16 %v1577
    %v1617 = vunpack.c.l.b16 %v1578
    %v1618 = vpack.c.b16 %v1603, %v1602
    %v1619 = vpack.c.b16 %v1605, %v1604
    %v1620 = vpack.c.b16 %v1607, %v1606
    %v1621 = vpack.c.b16 %v1609, %v1608
    %v1622 = vpack.c.b16 %v1611, %v1610
    %v1623 = vpack.c.b16 %v1613, %v1612
    %v1624 = vpack.c.b16 %v1615, %v1614
    %v1625 = vpack.c.b16 %v1617, %v1616
    %1634 = vmatprep.subr.bf16.mxu0 0
    %1635 = vmatpush1.bf16.msra.mxu0 %v1618
    %1636 = vmatprep.subr.bf16.mxu0 0
    %1637 = vmatpush1.bf16.msra.mxu0 %v1619
    %1638 = vmatprep.subr.bf16.mxu0 0
    %1639 = vmatpush1.bf16.msra.mxu0 %v1620
    %1640 = vmatprep.subr.bf16.mxu0 0
    %1641 = vmatpush1.bf16.msra.mxu0 %v1621
    %1642 = vmatprep.subr.bf16.mxu0 0
    %1643 = vmatpush1.bf16.msra.mxu0 %v1622
    %1644 = vmatprep.subr.bf16.mxu0 0
    %1645 = vmatpush1.bf16.msra.mxu0 %v1623
    %1646 = vmatprep.subr.bf16.mxu0 0
    %1647 = vmatpush1.bf16.msra.mxu0 %v1624
    %1648 = vmatprep.subr.bf16.mxu0 0
    %1649 = vmatpush1.bf16.msra.mxu0 %v1625
    %1650 = vmatprep.subr.bf16.mxu0 0
    %1651 = vmatpush1.bf16.msra.mxu0 0
    %1652 = vmatprep.subr.bf16.mxu0 0
    %1653 = vmatpush1.bf16.msra.mxu0 0
    %1654 = vmatprep.subr.bf16.mxu0 0
    %1655 = vmatpush1.bf16.msra.mxu0 0
    %1656 = vmatprep.subr.bf16.mxu0 0
    %1657 = vmatpush1.bf16.msra.mxu0 0
    %1658 = vmatprep.subr.bf16.mxu0 0
    %1659 = vmatpush1.bf16.msra.mxu0 0
    %1660 = vmatprep.subr.bf16.mxu0 0
    %1661 = vmatpush1.bf16.msra.mxu0 0
    %1662 = vmatprep.subr.bf16.mxu0 0
    %1663 = vmatpush1.bf16.msra.mxu0 0
    %1664 = vmatprep.subr.bf16.mxu0 0
    %1665 = vmatpush1.bf16.msra.mxu0 0
    %1666 = vmatprep.mubr.bf16.mxu0 0
    %1667 = vmatmul.mubr.bf16.gmra.mrb[0].mxu0 %v1562
    %v1668 = vpop.f32.mrb[0].mxu0
    %v1669 = vadd.f32 %v1584, %v1668
    %v1670 = vpop.f32.mrb[0].mxu0
    %v1671 = vpop.f32.mrb[0].mxu0
    %v1672 = vadd.f32 %v1584, %v1671
    %v1673 = vpop.f32.mrb[0].mxu0
    %1674 = vdwg.mxu0
    %v1675 = vadd.f32 %v1446, %v1669
    %v1676 = vadd.f32 %v1447, %v1672
    %1677 = vst.msk [vmem:[#allocation7] sm:$0xff] %vm81, %v1675
    %1678 = vst.msk [vmem:[#allocation7 + $0x8] sm:$0xff] %vm81, %v1676
    // Predicated region
    $region66: #{tpu_custom_call.1} parent=1 // pred_check
      _
    $region67: #{tpu_custom_call.1} parent=1 // pred_check_branch
      %1680 = sbr.rel (0) target = $region69
    $region68: #{tpu_custom_call.1} parent=1 // pred_region
      %s1682 = ssub.s32 256, 256
      %1683 = vsyncadd [#allocation4], %s1682
      %s1684 = sshll.u32 [#allocation7], 4
      %s1685 = int_to_ptr.vmem [resolvable:$true] %s1684
      %1690 = dma.vmem_to_hbm [thread:$0]  %s1685, 256, %s14, [#allocation4], 128, 128, 8
    $region69: #{tpu_custom_call.1} parent=1 // pred_fallthru
      _
    // Predicated region
    $region70: #{tpu_custom_call.1} parent=1 // pred_check
      _
    $region71: #{tpu_custom_call.1} parent=1 // pred_check_branch
      %1692 = sbr.rel (0) target = $region73
    $region72: #{tpu_custom_call.1} parent=1 // pred_region
      %1693 = dma.done [#allocation4], 256
    $region73: #{tpu_custom_call.1} parent=1 // pred_fallthru
      _
    %1694 = vsyncpa [#allocation3], 1
    %1695 = vsyncpa [#allocation6], 1
    %1696 = vsyncpa [#allocation4], 1

</llo_original>
